<compile_context>
chip_gen: v7x
topology: tpu7x:2x2x1
jax: 0.10.0
libtpu: 0.0.40
codegen_flags: <defaults>
</compile_context>

<pallas_src>
import functools
import math

import jax
import jax.numpy as jnp
from jax.experimental import pallas as pl
from jax.experimental.pallas import tpu as pltpu

# ----- small synthetic BERT config -----
VOCAB = 64
TYPE_VOCAB = 2
MAX_POS = 16
HIDDEN = 32
NUM_HEADS = 2
HEAD_DIM = HIDDEN // NUM_HEADS
INTERMEDIATE = 64
NUM_LAYERS = 2
LN_EPS = 1e-12


# ---------------- in-kernel helpers ----------------
def _layernorm(y, g, b):
    mean = jnp.mean(y, axis=-1, keepdims=True)
    c = y - mean
    var = jnp.mean(c * c, axis=-1, keepdims=True)
    return c * jax.lax.rsqrt(var + LN_EPS) * g + b


def _gelu(x):  # exact erf-GELU, as in HF BertIntermediate
    return 0.5 * x * (1.0 + jax.lax.erf(x * (1.0 / math.sqrt(2.0))))


# ---------------- fused BERT-stack kernel (grid over layers) ----------------
def _bert_fused_kernel(
    # inputs
    emb_ref, mask_ref, eg_ref, eb_ref,
    wqkv_ref, bqkv_ref, wo_ref, bo_ref, ln1g_ref, ln1b_ref,
    wi_ref, bi_ref, wo2_ref, bo2_ref, ln2g_ref, ln2b_ref,
    wp_ref, bp_ref,
    # outputs
    hid_ref, pool_ref,
    *, batch, seq,
):
    l = pl.program_id(0)
    n_layers = pl.num_programs(0)

    # --- embedding LayerNorm (layer 0 only). hid_ref is the VMEM-resident x ---
    @pl.when(l == 0)
    def _():
        hid_ref[...] = _layernorm(
            emb_ref[...], eg_ref[...], eb_ref[...]
        ).astype(hid_ref.dtype)

    x = hid_ref[...]  # (B*S, HIDDEN), f32, carried across layers in VMEM

    # --- packed QKV projection: one [HIDDEN, 3*HIDDEN] matmul ---
    qkv = jnp.dot(x, wqkv_ref[...], preferred_element_type=jnp.float32) + bqkv_ref[...]

    mask = mask_ref[...]  # (B, S) additive mask
    scale = 1.0 / math.sqrt(HEAD_DIM)

    # --- self-attention, heads handled by static unrolled slices (B*H tiny) ---
    ctx_rows = []
    for b in range(batch):
        r0 = b * seq
        mask_b = mask[b:b + 1, :]  # (1, S), broadcasts over query rows
        head_ctx = []
        for h in range(NUM_HEADS):
            c0 = h * HEAD_DIM
            q_bh = qkv[r0:r0 + seq, c0:c0 + HEAD_DIM]
            k_bh = qkv[r0:r0 + seq, HIDDEN + c0:HIDDEN + c0 + HEAD_DIM]
            v_bh = qkv[r0:r0 + seq, 2 * HIDDEN + c0:2 * HIDDEN + c0 + HEAD_DIM]
            # q @ k^T expressed directly via dot_general (no explicit transpose)
            s = jax.lax.dot_general(
                q_bh, k_bh, (((1,), (1,)), ((), ())),
                preferred_element_type=jnp.float32,
            ) * scale
            s = s + mask_b
            s = s - jnp.max(s, axis=-1, keepdims=True)
            p = jnp.exp(s)
            p = p * pl.reciprocal(jnp.sum(p, axis=-1, keepdims=True), approx=True)
            head_ctx.append(jnp.dot(p, v_bh, preferred_element_type=jnp.float32))
        ctx_rows.append(jnp.concatenate(head_ctx, axis=-1))  # (S, HIDDEN)
    ctx = jnp.concatenate(ctx_rows, axis=0)  # (B*S, HIDDEN)

    # --- attention output projection + residual + LN ---
    attn = jnp.dot(ctx, wo_ref[...], preferred_element_type=jnp.float32) + bo_ref[...]
    x = _layernorm(attn + x, ln1g_ref[...], ln1b_ref[...])

    # --- feed-forward + residual + LN ---
    inter = jnp.dot(x, wi_ref[...], preferred_element_type=jnp.float32) + bi_ref[...]
    inter = _gelu(inter)
    ffn = jnp.dot(inter, wo2_ref[...], preferred_element_type=jnp.float32) + bo2_ref[...]
    x = _layernorm(ffn + x, ln2g_ref[...], ln2b_ref[...])

    hid_ref[...] = x.astype(hid_ref.dtype)

    # --- pooler on the last layer only: tanh(W * h_[CLS] + b) ---
    @pl.when(l == n_layers - 1)
    def _():
        cls = jnp.concatenate(
            [x[b * seq:b * seq + 1, :] for b in range(batch)], axis=0
        )  # (B, HIDDEN)
        pool_ref[...] = jnp.tanh(
            jnp.dot(cls, wp_ref[...], preferred_element_type=jnp.float32) + bp_ref[...]
        ).astype(pool_ref.dtype)


# ---------------- BlockSpec helpers ----------------
def _rep_spec(shape):
    # same (full) block on every grid step -> stays VMEM-resident, DMA'd once
    nd = len(shape)
    return pl.BlockSpec(shape, lambda l, _nd=nd: (0,) * _nd)


def _layer_spec(shape):
    # per-layer weight slice; leading (layer) dim squeezed out of the kernel ref
    nd = len(shape)
    return pl.BlockSpec((None,) + shape, lambda l, _nd=nd: (l,) + (0,) * _nd)


# ---------------- parameter init (deterministic, synthetic, stacked) ----------------
def init_params(key):
    std = 0.02

    def normal(k, shape):
        return std * jax.random.normal(k, shape, dtype=jnp.float32)

    keys = jax.random.split(key, 8)
    L, H, I = NUM_LAYERS, HIDDEN, INTERMEDIATE
    return {
        "word_emb": normal(keys[0], (VOCAB, H)),
        "pos_emb": normal(keys[1], (MAX_POS, H)),
        "type_emb": normal(keys[2], (TYPE_VOCAB, H)),
        "emb_ln_g": jnp.ones((1, H), jnp.float32),
        "emb_ln_b": jnp.zeros((1, H), jnp.float32),
        # per-layer weights stacked along a leading layer axis
        "wqkv": normal(keys[3], (L, H, 3 * H)),
        "bqkv": jnp.zeros((L, 1, 3 * H), jnp.float32),
        "wo": normal(keys[4], (L, H, H)),
        "bo": jnp.zeros((L, 1, H), jnp.float32),
        "ln1_g": jnp.ones((L, 1, H), jnp.float32),
        "ln1_b": jnp.zeros((L, 1, H), jnp.float32),
        "wi": normal(keys[5], (L, H, I)),
        "bi": jnp.zeros((L, 1, I), jnp.float32),
        "wo2": normal(keys[6], (L, I, H)),
        "bo2": jnp.zeros((L, 1, H), jnp.float32),
        "ln2_g": jnp.ones((L, 1, H), jnp.float32),
        "ln2_b": jnp.zeros((L, 1, H), jnp.float32),
        "wp": normal(keys[7], (H, H)),
        "bp": jnp.zeros((1, H), jnp.float32),
    }


# ---------------- BertEncoder.forward ----------------
def bert_encoder_forward(params, input_ids, input_mask, segment_ids):
    B, S = input_ids.shape
    M = B * S

    # embeddings: data-dependent gather stays in plain JAX glue
    positions = jnp.arange(S, dtype=jnp.int32)
    emb = (
        jnp.take(params["word_emb"], input_ids, axis=0)
        + jnp.take(params["pos_emb"], positions, axis=0)[None, :, :]
        + jnp.take(params["type_emb"], segment_ids, axis=0)
    ).reshape(M, HIDDEN)
    # dropout is a no-op in eval mode

    # extended additive attention mask: (1 - mask) * -10000, per batch row
    mask_add = (1.0 - input_mask.astype(jnp.float32)) * -10000.0  # (B, S)

    kernel_inputs = (
        emb, mask_add, params["emb_ln_g"], params["emb_ln_b"],
        params["wqkv"], params["bqkv"], params["wo"], params["bo"],
        params["ln1_g"], params["ln1_b"],
        params["wi"], params["bi"], params["wo2"], params["bo2"],
        params["ln2_g"], params["ln2_b"],
        params["wp"], params["bp"],
    )

    # advisory cost estimate for XLA's scheduler
    flops_layer = (
        2 * M * HIDDEN * 3 * HIDDEN                     # packed QKV proj
        + 2 * B * NUM_HEADS * S * S * HEAD_DIM * 2      # scores + ctx
        + 2 * M * HIDDEN * HIDDEN                       # attention out proj
        + 2 * M * HIDDEN * INTERMEDIATE                 # FFN in
        + 2 * M * INTERMEDIATE * HIDDEN                 # FFN out
    )
    flops = NUM_LAYERS * flops_layer + 2 * B * HIDDEN * HIDDEN
    transcendentals = (
        NUM_LAYERS * (B * NUM_HEADS * S * S + M * INTERMEDIATE) + B * HIDDEN
    )
    bytes_accessed = sum(int(a.size) * 4 for a in kernel_inputs) + (M + B) * HIDDEN * 4

    in_specs = [
        _rep_spec((M, HIDDEN)),                # emb (read at layer 0)
        _rep_spec((B, S)),                     # additive attention mask
        _rep_spec((1, HIDDEN)),                # emb_ln gamma
        _rep_spec((1, HIDDEN)),                # emb_ln beta
        _layer_spec((HIDDEN, 3 * HIDDEN)),     # wqkv
        _layer_spec((1, 3 * HIDDEN)),          # bqkv
        _layer_spec((HIDDEN, HIDDEN)),         # wo
        _layer_spec((1, HIDDEN)),              # bo
        _layer_spec((1, HIDDEN)),              # ln1 gamma
        _layer_spec((1, HIDDEN)),              # ln1 beta
        _layer_spec((HIDDEN, INTERMEDIATE)),   # wi
        _layer_spec((1, INTERMEDIATE)),        # bi
        _layer_spec((INTERMEDIATE, HIDDEN)),   # wo2
        _layer_spec((1, HIDDEN)),              # bo2
        _layer_spec((1, HIDDEN)),              # ln2 gamma
        _layer_spec((1, HIDDEN)),              # ln2 beta
        _rep_spec((HIDDEN, HIDDEN)),           # pooler weight
        _rep_spec((1, HIDDEN)),                # pooler bias
    ]
    out_specs = (
        _rep_spec((M, HIDDEN)),   # last hidden state (VMEM-resident across layers)
        _rep_spec((B, HIDDEN)),   # pooled output
    )

    last_hidden, pooled = pl.pallas_call(
        functools.partial(_bert_fused_kernel, batch=B, seq=S),
        grid=(NUM_LAYERS,),
        in_specs=in_specs,
        out_specs=out_specs,
        out_shape=(
            jax.ShapeDtypeStruct((M, HIDDEN), jnp.float32),
            jax.ShapeDtypeStruct((B, HIDDEN), jnp.float32),
        ),
        compiler_params=pltpu.CompilerParams(
            dimension_semantics=("arbitrary",),   # layers are sequential
        ),
        cost_estimate=pl.CostEstimate(
            flops=flops,
            transcendentals=transcendentals,
            bytes_accessed=bytes_accessed,
        ),
    )(*kernel_inputs)

    # TODO(synk): at real BERT sizes (hidden>=768, seq>=512) tile the batch*seq
    # axis as an additional 'parallel' grid dim and cap vmem_limit_bytes (v7x).
    return last_hidden.reshape(B, S, HIDDEN), pooled


if __name__ == "__main__":
    key = jax.random.PRNGKey(0)
    k_param, k_ids = jax.random.split(key)

    B, S = 2, 8
    params = init_params(k_param)
    all_input_ids = jax.random.randint(k_ids, (B, S), 0, VOCAB, dtype=jnp.int32)
    all_input_mask = jnp.ones((B, S), dtype=jnp.int32).at[:, 6:].set(0)
    all_segment_ids = jnp.zeros((B, S), dtype=jnp.int32).at[:, 4:].set(1)

    fwd = jax.jit(bert_encoder_forward)
    last_hidden, pooled = fwd(params, all_input_ids, all_input_mask, all_segment_ids)
    jax.block_until_ready((last_hidden, pooled))

    assert last_hidden.shape == (B, S, HIDDEN)
    assert pooled.shape == (B, HIDDEN)
    assert bool(jnp.all(jnp.isfinite(last_hidden))) and bool(
        jnp.all(jnp.isfinite(pooled))
    )
    print("KERNEL_OK")
</pallas_src>

<mosaic_0001>
module attributes {stable_mosaic.version = 11 : i64} {
  func.func @_bert_fused_kernel(%arg0: i32, %arg1: memref<16x32xf32, #tpu.memory_space<vmem>>, %arg2: memref<2x8xf32, #tpu.memory_space<vmem>>, %arg3: memref<1x32xf32, #tpu.memory_space<vmem>>, %arg4: memref<1x32xf32, #tpu.memory_space<vmem>>, %arg5: memref<1x32x96xf32, #tpu.memory_space<vmem>>, %arg6: memref<1x1x96xf32, #tpu.memory_space<vmem>>, %arg7: memref<1x32x32xf32, #tpu.memory_space<vmem>>, %arg8: memref<1x1x32xf32, #tpu.memory_space<vmem>>, %arg9: memref<1x1x32xf32, #tpu.memory_space<vmem>>, %arg10: memref<1x1x32xf32, #tpu.memory_space<vmem>>, %arg11: memref<1x32x64xf32, #tpu.memory_space<vmem>>, %arg12: memref<1x1x64xf32, #tpu.memory_space<vmem>>, %arg13: memref<1x64x32xf32, #tpu.memory_space<vmem>>, %arg14: memref<1x1x32xf32, #tpu.memory_space<vmem>>, %arg15: memref<1x1x32xf32, #tpu.memory_space<vmem>>, %arg16: memref<1x1x32xf32, #tpu.memory_space<vmem>>, %arg17: memref<32x32xf32, #tpu.memory_space<vmem>>, %arg18: memref<1x32xf32, #tpu.memory_space<vmem>>, %arg19: memref<16x32xf32, #tpu.memory_space<vmem>>, %arg20: memref<2x32xf32, #tpu.memory_space<vmem>>) attributes {dimension_semantics = [#tpu.dimension_semantics<arbitrary>], iteration_bounds = array<i64: 2>, scalar_prefetch = 0 : i64, scratch_operands = 0 : i64, tpu.core_type = #tpu.core_type<tc>, window_params = [{pipeline_mode = #tpu.pipeline_mode<synchronous>, transform_indices = @transform_0, window_bounds = array<i64: 16, 32>}, {pipeline_mode = #tpu.pipeline_mode<synchronous>, transform_indices = @transform_1, window_bounds = array<i64: 2, 8>}, {pipeline_mode = #tpu.pipeline_mode<synchronous>, transform_indices = @transform_2, window_bounds = array<i64: 1, 32>}, {pipeline_mode = #tpu.pipeline_mode<synchronous>, transform_indices = @transform_3, window_bounds = array<i64: 1, 32>}, {transform_indices = @transform_4, window_bounds = array<i64: 1, 32, 96>}, {transform_indices = @transform_5, window_bounds = array<i64: 1, 1, 96>}, {transform_indices = @transform_6, window_bounds = array<i64: 1, 32, 32>}, {transform_indices = @transform_7, window_bounds = array<i64: 1, 1, 32>}, {transform_indices = @transform_8, window_bounds = array<i64: 1, 1, 32>}, {transform_indices = @transform_9, window_bounds = array<i64: 1, 1, 32>}, {transform_indices = @transform_10, window_bounds = array<i64: 1, 32, 64>}, {transform_indices = @transform_11, window_bounds = array<i64: 1, 1, 64>}, {transform_indices = @transform_12, window_bounds = array<i64: 1, 64, 32>}, {transform_indices = @transform_13, window_bounds = array<i64: 1, 1, 32>}, {transform_indices = @transform_14, window_bounds = array<i64: 1, 1, 32>}, {transform_indices = @transform_15, window_bounds = array<i64: 1, 1, 32>}, {pipeline_mode = #tpu.pipeline_mode<synchronous>, transform_indices = @transform_16, window_bounds = array<i64: 32, 32>}, {pipeline_mode = #tpu.pipeline_mode<synchronous>, transform_indices = @transform_17, window_bounds = array<i64: 1, 32>}, {pipeline_mode = #tpu.pipeline_mode<synchronous>, transform_indices = @transform_18, window_bounds = array<i64: 16, 32>}, {pipeline_mode = #tpu.pipeline_mode<synchronous>, transform_indices = @transform_19, window_bounds = array<i64: 2, 32>}]} {
    %c0_i32 = arith.constant 0 : i32
    %0 = arith.cmpi eq, %arg0, %c0_i32 : i32
    %1 = arith.extui %0 : i1 to i32
    %c0_i32_0 = arith.constant 0 : i32
    %2 = arith.cmpi ne, %1, %c0_i32_0 : i32
    scf.if %2 {
      %c0_79 = arith.constant 0 : index
      %c0_80 = arith.constant 0 : index
      %176 = vector.load %arg1[%c0_79, %c0_80] : memref<16x32xf32, #tpu.memory_space<vmem>>, vector<16x32xf32>
      %c0_81 = arith.constant 0 : index
      %c0_82 = arith.constant 0 : index
      %177 = vector.load %arg3[%c0_81, %c0_82] : memref<1x32xf32, #tpu.memory_space<vmem>>, vector<1x32xf32>
      %c0_83 = arith.constant 0 : index
      %c0_84 = arith.constant 0 : index
      %178 = vector.load %arg4[%c0_83, %c0_84] : memref<1x32xf32, #tpu.memory_space<vmem>>, vector<1x32xf32>
      %cst_85 = arith.constant dense<0.000000e+00> : vector<16xf32>
      %179 = vector.multi_reduction <add>, %176, %cst_85 [1] : vector<16x32xf32> to vector<16xf32>
      %180 = vector.shape_cast %179 : vector<16xf32> to vector<16x1xf32>
      %cst_86 = arith.constant 3.200000e+01 : f32
      %181 = vector.broadcast %cst_86 : f32 to vector<16x1xf32>
      %182 = arith.divf %180, %181 : vector<16x1xf32>
      %183 = vector.broadcast %182 : vector<16x1xf32> to vector<16x32xf32>
      %184 = arith.subf %176, %183 : vector<16x32xf32>
      %185 = arith.mulf %184, %184 : vector<16x32xf32>
      %cst_87 = arith.constant dense<0.000000e+00> : vector<16xf32>
      %186 = vector.multi_reduction <add>, %185, %cst_87 [1] : vector<16x32xf32> to vector<16xf32>
      %187 = vector.shape_cast %186 : vector<16xf32> to vector<16x1xf32>
      %cst_88 = arith.constant 3.200000e+01 : f32
      %188 = vector.broadcast %cst_88 : f32 to vector<16x1xf32>
      %189 = arith.divf %187, %188 : vector<16x1xf32>
      %cst_89 = arith.constant 9.99999996E-13 : f32
      %190 = vector.broadcast %cst_89 : f32 to vector<16x1xf32>
      %191 = arith.addf %189, %190 : vector<16x1xf32>
      %192 = math.rsqrt %191 : vector<16x1xf32>
      %193 = vector.broadcast %192 : vector<16x1xf32> to vector<16x32xf32>
      %194 = arith.mulf %184, %193 : vector<16x32xf32>
      %195 = vector.broadcast %177 : vector<1x32xf32> to vector<16x32xf32>
      %196 = arith.mulf %194, %195 : vector<16x32xf32>
      %197 = vector.broadcast %178 : vector<1x32xf32> to vector<16x32xf32>
      %198 = arith.addf %196, %197 : vector<16x32xf32>
      %c0_90 = arith.constant 0 : index
      %c0_91 = arith.constant 0 : index
      %199 = vector.load %arg19[%c0_90, %c0_91] : memref<16x32xf32, #tpu.memory_space<vmem>>, vector<16x32xf32>
      tpu.vector_store %arg19[%c0_90, %c0_91], %198 {strides = array<i32>} : memref<16x32xf32, #tpu.memory_space<vmem>>, vector<16x32xf32>,
    } else {
    }
    %c0 = arith.constant 0 : index
    %c0_1 = arith.constant 0 : index
    %3 = vector.load %arg19[%c0, %c0_1] : memref<16x32xf32, #tpu.memory_space<vmem>>, vector<16x32xf32>
    %c0_2 = arith.constant 0 : index
    %c0_3 = arith.constant 0 : index
    %c0_4 = arith.constant 0 : index
    %4 = vector.load %arg5[%c0_2, %c0_3, %c0_4] : memref<1x32x96xf32, #tpu.memory_space<vmem>>, vector<1x32x96xf32>
    %5 = vector.shape_cast %4 : vector<1x32x96xf32> to vector<32x96xf32>
    %cst = arith.constant dense<0.000000e+00> : vector<16x96xf32>
    %6 = tpu.matmul %3, %5, %cst {dimension_numbers = #tpu.dot_dimension_numbers<[1], [0], [0], [1], [0, 0, 1, 1], [], []>} : vector<16x32xf32>, vector<32x96xf32>, vector<16x96xf32> -> vector<16x96xf32>
    %c0_5 = arith.constant 0 : index
    %c0_6 = arith.constant 0 : index
    %c0_7 = arith.constant 0 : index
    %7 = vector.load %arg6[%c0_5, %c0_6, %c0_7] : memref<1x1x96xf32, #tpu.memory_space<vmem>>, vector<1x1x96xf32>
    %8 = vector.shape_cast %7 : vector<1x1x96xf32> to vector<1x96xf32>
    %9 = vector.broadcast %8 : vector<1x96xf32> to vector<16x96xf32>
    %10 = arith.addf %6, %9 : vector<16x96xf32>
    %c0_8 = arith.constant 0 : index
    %c0_9 = arith.constant 0 : index
    %11 = vector.load %arg2[%c0_8, %c0_9] : memref<2x8xf32, #tpu.memory_space<vmem>>, vector<2x8xf32>
    %12 = vector.extract_strided_slice %11 {offsets = [0, 0], sizes = [1, 8], strides = [1, 1]} : vector<2x8xf32> to vector<1x8xf32>
    %13 = vector.extract_strided_slice %10 {offsets = [0, 0], sizes = [8, 16], strides = [1, 1]} : vector<16x96xf32> to vector<8x16xf32>
    %14 = vector.extract_strided_slice %10 {offsets = [0, 32], sizes = [8, 16], strides = [1, 1]} : vector<16x96xf32> to vector<8x16xf32>
    %15 = vector.extract_strided_slice %10 {offsets = [0, 64], sizes = [8, 16], strides = [1, 1]} : vector<16x96xf32> to vector<8x16xf32>
    %cst_10 = arith.constant dense<0.000000e+00> : vector<8x8xf32>
    %16 = tpu.matmul %13, %14, %cst_10 {dimension_numbers = #tpu.dot_dimension_numbers<[1], [1], [0], [0], [0, 0, 1, 0], [], []>} : vector<8x16xf32>, vector<8x16xf32>, vector<8x8xf32> -> vector<8x8xf32>
    %cst_11 = arith.constant 2.500000e-01 : f32
    %17 = vector.broadcast %cst_11 : f32 to vector<8x8xf32>
    %18 = arith.mulf %16, %17 : vector<8x8xf32>
    %19 = vector.broadcast %12 : vector<1x8xf32> to vector<8x8xf32>
    %20 = arith.addf %18, %19 : vector<8x8xf32>
    %cst_12 = arith.constant dense<0xFF800000> : vector<8xf32>
    %21 = vector.multi_reduction <maximumf>, %20, %cst_12 [1] : vector<8x8xf32> to vector<8xf32>
    %22 = vector.shape_cast %21 : vector<8xf32> to vector<8x1xf32>
    %23 = vector.broadcast %22 : vector<8x1xf32> to vector<8x8xf32>
    %24 = arith.subf %20, %23 : vector<8x8xf32>
    %25 = math.exp %24 : vector<8x8xf32>
    %cst_13 = arith.constant dense<0.000000e+00> : vector<8xf32>
    %26 = vector.multi_reduction <add>, %25, %cst_13 [1] : vector<8x8xf32> to vector<8xf32>
    %27 = vector.shape_cast %26 : vector<8xf32> to vector<8x1xf32>
    %28 = tpu.reciprocal %27 {approx = true} : vector<8x1xf32> -> vector<8x1xf32>
    %29 = vector.broadcast %28 : vector<8x1xf32> to vector<8x8xf32>
    %30 = arith.mulf %25, %29 : vector<8x8xf32>
    %cst_14 = arith.constant dense<0.000000e+00> : vector<8x16xf32>
    %31 = tpu.matmul %30, %15, %cst_14 {dimension_numbers = #tpu.dot_dimension_numbers<[1], [0], [0], [1], [0, 0, 1, 1], [], []>} : vector<8x8xf32>, vector<8x16xf32>, vector<8x16xf32> -> vector<8x16xf32>
    %32 = vector.extract_strided_slice %10 {offsets = [0, 16], sizes = [8, 16], strides = [1, 1]} : vector<16x96xf32> to vector<8x16xf32>
    %33 = vector.extract_strided_slice %10 {offsets = [0, 48], sizes = [8, 16], strides = [1, 1]} : vector<16x96xf32> to vector<8x16xf32>
    %34 = vector.extract_strided_slice %10 {offsets = [0, 80], sizes = [8, 16], strides = [1, 1]} : vector<16x96xf32> to vector<8x16xf32>
    %cst_15 = arith.constant dense<0.000000e+00> : vector<8x8xf32>
    %35 = tpu.matmul %32, %33, %cst_15 {dimension_numbers = #tpu.dot_dimension_numbers<[1], [1], [0], [0], [0, 0, 1, 0], [], []>} : vector<8x16xf32>, vector<8x16xf32>, vector<8x8xf32> -> vector<8x8xf32>
    %cst_16 = arith.constant 2.500000e-01 : f32
    %36 = vector.broadcast %cst_16 : f32 to vector<8x8xf32>
    %37 = arith.mulf %35, %36 : vector<8x8xf32>
    %38 = vector.broadcast %12 : vector<1x8xf32> to vector<8x8xf32>
    %39 = arith.addf %37, %38 : vector<8x8xf32>
    %cst_17 = arith.constant dense<0xFF800000> : vector<8xf32>
    %40 = vector.multi_reduction <maximumf>, %39, %cst_17 [1] : vector<8x8xf32> to vector<8xf32>
    %41 = vector.shape_cast %40 : vector<8xf32> to vector<8x1xf32>
    %42 = vector.broadcast %41 : vector<8x1xf32> to vector<8x8xf32>
    %43 = arith.subf %39, %42 : vector<8x8xf32>
    %44 = math.exp %43 : vector<8x8xf32>
    %cst_18 = arith.constant dense<0.000000e+00> : vector<8xf32>
    %45 = vector.multi_reduction <add>, %44, %cst_18 [1] : vector<8x8xf32> to vector<8xf32>
    %46 = vector.shape_cast %45 : vector<8xf32> to vector<8x1xf32>
    %47 = tpu.reciprocal %46 {approx = true} : vector<8x1xf32> -> vector<8x1xf32>
    %48 = vector.broadcast %47 : vector<8x1xf32> to vector<8x8xf32>
    %49 = arith.mulf %44, %48 : vector<8x8xf32>
    %cst_19 = arith.constant dense<0.000000e+00> : vector<8x16xf32>
    %50 = tpu.matmul %49, %34, %cst_19 {dimension_numbers = #tpu.dot_dimension_numbers<[1], [0], [0], [1], [0, 0, 1, 1], [], []>} : vector<8x8xf32>, vector<8x16xf32>, vector<8x16xf32> -> vector<8x16xf32>
    %51 = tpu.concatenate %31, %50 in 1 : vector<8x16xf32>, vector<8x16xf32> -> vector<8x32xf32>
    %52 = vector.extract_strided_slice %11 {offsets = [1, 0], sizes = [1, 8], strides = [1, 1]} : vector<2x8xf32> to vector<1x8xf32>
    %53 = vector.extract_strided_slice %10 {offsets = [8, 0], sizes = [8, 16], strides = [1, 1]} : vector<16x96xf32> to vector<8x16xf32>
    %54 = vector.extract_strided_slice %10 {offsets = [8, 32], sizes = [8, 16], strides = [1, 1]} : vector<16x96xf32> to vector<8x16xf32>
    %55 = vector.extract_strided_slice %10 {offsets = [8, 64], sizes = [8, 16], strides = [1, 1]} : vector<16x96xf32> to vector<8x16xf32>
    %cst_20 = arith.constant dense<0.000000e+00> : vector<8x8xf32>
    %56 = tpu.matmul %53, %54, %cst_20 {dimension_numbers = #tpu.dot_dimension_numbers<[1], [1], [0], [0], [0, 0, 1, 0], [], []>} : vector<8x16xf32>, vector<8x16xf32>, vector<8x8xf32> -> vector<8x8xf32>
    %cst_21 = arith.constant 2.500000e-01 : f32
    %57 = vector.broadcast %cst_21 : f32 to vector<8x8xf32>
    %58 = arith.mulf %56, %57 : vector<8x8xf32>
    %59 = vector.broadcast %52 : vector<1x8xf32> to vector<8x8xf32>
    %60 = arith.addf %58, %59 : vector<8x8xf32>
    %cst_22 = arith.constant dense<0xFF800000> : vector<8xf32>
    %61 = vector.multi_reduction <maximumf>, %60, %cst_22 [1] : vector<8x8xf32> to vector<8xf32>
    %62 = vector.shape_cast %61 : vector<8xf32> to vector<8x1xf32>
    %63 = vector.broadcast %62 : vector<8x1xf32> to vector<8x8xf32>
    %64 = arith.subf %60, %63 : vector<8x8xf32>
    %65 = math.exp %64 : vector<8x8xf32>
    %cst_23 = arith.constant dense<0.000000e+00> : vector<8xf32>
    %66 = vector.multi_reduction <add>, %65, %cst_23 [1] : vector<8x8xf32> to vector<8xf32>
    %67 = vector.shape_cast %66 : vector<8xf32> to vector<8x1xf32>
    %68 = tpu.reciprocal %67 {approx = true} : vector<8x1xf32> -> vector<8x1xf32>
    %69 = vector.broadcast %68 : vector<8x1xf32> to vector<8x8xf32>
    %70 = arith.mulf %65, %69 : vector<8x8xf32>
    %cst_24 = arith.constant dense<0.000000e+00> : vector<8x16xf32>
    %71 = tpu.matmul %70, %55, %cst_24 {dimension_numbers = #tpu.dot_dimension_numbers<[1], [0], [0], [1], [0, 0, 1, 1], [], []>} : vector<8x8xf32>, vector<8x16xf32>, vector<8x16xf32> -> vector<8x16xf32>
    %72 = vector.extract_strided_slice %10 {offsets = [8, 16], sizes = [8, 16], strides = [1, 1]} : vector<16x96xf32> to vector<8x16xf32>
    %73 = vector.extract_strided_slice %10 {offsets = [8, 48], sizes = [8, 16], strides = [1, 1]} : vector<16x96xf32> to vector<8x16xf32>
    %74 = vector.extract_strided_slice %10 {offsets = [8, 80], sizes = [8, 16], strides = [1, 1]} : vector<16x96xf32> to vector<8x16xf32>
    %cst_25 = arith.constant dense<0.000000e+00> : vector<8x8xf32>
    %75 = tpu.matmul %72, %73, %cst_25 {dimension_numbers = #tpu.dot_dimension_numbers<[1], [1], [0], [0], [0, 0, 1, 0], [], []>} : vector<8x16xf32>, vector<8x16xf32>, vector<8x8xf32> -> vector<8x8xf32>
    %cst_26 = arith.constant 2.500000e-01 : f32
    %76 = vector.broadcast %cst_26 : f32 to vector<8x8xf32>
    %77 = arith.mulf %75, %76 : vector<8x8xf32>
    %78 = vector.broadcast %52 : vector<1x8xf32> to vector<8x8xf32>
    %79 = arith.addf %77, %78 : vector<8x8xf32>
    %cst_27 = arith.constant dense<0xFF800000> : vector<8xf32>
    %80 = vector.multi_reduction <maximumf>, %79, %cst_27 [1] : vector<8x8xf32> to vector<8xf32>
    %81 = vector.shape_cast %80 : vector<8xf32> to vector<8x1xf32>
    %82 = vector.broadcast %81 : vector<8x1xf32> to vector<8x8xf32>
    %83 = arith.subf %79, %82 : vector<8x8xf32>
    %84 = math.exp %83 : vector<8x8xf32>
    %cst_28 = arith.constant dense<0.000000e+00> : vector<8xf32>
    %85 = vector.multi_reduction <add>, %84, %cst_28 [1] : vector<8x8xf32> to vector<8xf32>
    %86 = vector.shape_cast %85 : vector<8xf32> to vector<8x1xf32>
    %87 = tpu.reciprocal %86 {approx = true} : vector<8x1xf32> -> vector<8x1xf32>
    %88 = vector.broadcast %87 : vector<8x1xf32> to vector<8x8xf32>
    %89 = arith.mulf %84, %88 : vector<8x8xf32>
    %cst_29 = arith.constant dense<0.000000e+00> : vector<8x16xf32>
    %90 = tpu.matmul %89, %74, %cst_29 {dimension_numbers = #tpu.dot_dimension_numbers<[1], [0], [0], [1], [0, 0, 1, 1], [], []>} : vector<8x8xf32>, vector<8x16xf32>, vector<8x16xf32> -> vector<8x16xf32>
    %91 = tpu.concatenate %71, %90 in 1 : vector<8x16xf32>, vector<8x16xf32> -> vector<8x32xf32>
    %92 = tpu.concatenate %51, %91 in 0 : vector<8x32xf32>, vector<8x32xf32> -> vector<16x32xf32>
    %c0_30 = arith.constant 0 : index
    %c0_31 = arith.constant 0 : index
    %c0_32 = arith.constant 0 : index
    %93 = vector.load %arg7[%c0_30, %c0_31, %c0_32] : memref<1x32x32xf32, #tpu.memory_space<vmem>>, vector<1x32x32xf32>
    %94 = vector.shape_cast %93 : vector<1x32x32xf32> to vector<32x32xf32>
    %cst_33 = arith.constant dense<0.000000e+00> : vector<16x32xf32>
    %95 = tpu.matmul %92, %94, %cst_33 {dimension_numbers = #tpu.dot_dimension_numbers<[1], [0], [0], [1], [0, 0, 1, 1], [], []>} : vector<16x32xf32>, vector<32x32xf32>, vector<16x32xf32> -> vector<16x32xf32>
    %c0_34 = arith.constant 0 : index
    %c0_35 = arith.constant 0 : index
    %c0_36 = arith.constant 0 : index
    %96 = vector.load %arg8[%c0_34, %c0_35, %c0_36] : memref<1x1x32xf32, #tpu.memory_space<vmem>>, vector<1x1x32xf32>
    %97 = vector.shape_cast %96 : vector<1x1x32xf32> to vector<1x32xf32>
    %98 = vector.broadcast %97 : vector<1x32xf32> to vector<16x32xf32>
    %99 = arith.addf %95, %98 : vector<16x32xf32>
    %100 = arith.addf %99, %3 : vector<16x32xf32>
    %c0_37 = arith.constant 0 : index
    %c0_38 = arith.constant 0 : index
    %c0_39 = arith.constant 0 : index
    %101 = vector.load %arg9[%c0_37, %c0_38, %c0_39] : memref<1x1x32xf32, #tpu.memory_space<vmem>>, vector<1x1x32xf32>
    %102 = vector.shape_cast %101 : vector<1x1x32xf32> to vector<1x32xf32>
    %c0_40 = arith.constant 0 : index
    %c0_41 = arith.constant 0 : index
    %c0_42 = arith.constant 0 : index
    %103 = vector.load %arg10[%c0_40, %c0_41, %c0_42] : memref<1x1x32xf32, #tpu.memory_space<vmem>>, vector<1x1x32xf32>
    %104 = vector.shape_cast %103 : vector<1x1x32xf32> to vector<1x32xf32>
    %cst_43 = arith.constant dense<0.000000e+00> : vector<16xf32>
    %105 = vector.multi_reduction <add>, %100, %cst_43 [1] : vector<16x32xf32> to vector<16xf32>
    %106 = vector.shape_cast %105 : vector<16xf32> to vector<16x1xf32>
    %cst_44 = arith.constant 3.200000e+01 : f32
    %107 = vector.broadcast %cst_44 : f32 to vector<16x1xf32>
    %108 = arith.divf %106, %107 : vector<16x1xf32>
    %109 = vector.broadcast %108 : vector<16x1xf32> to vector<16x32xf32>
    %110 = arith.subf %100, %109 : vector<16x32xf32>
    %111 = arith.mulf %110, %110 : vector<16x32xf32>
    %cst_45 = arith.constant dense<0.000000e+00> : vector<16xf32>
    %112 = vector.multi_reduction <add>, %111, %cst_45 [1] : vector<16x32xf32> to vector<16xf32>
    %113 = vector.shape_cast %112 : vector<16xf32> to vector<16x1xf32>
    %cst_46 = arith.constant 3.200000e+01 : f32
    %114 = vector.broadcast %cst_46 : f32 to vector<16x1xf32>
    %115 = arith.divf %113, %114 : vector<16x1xf32>
    %cst_47 = arith.constant 9.99999996E-13 : f32
    %116 = vector.broadcast %cst_47 : f32 to vector<16x1xf32>
    %117 = arith.addf %115, %116 : vector<16x1xf32>
    %118 = math.rsqrt %117 : vector<16x1xf32>
    %119 = vector.broadcast %118 : vector<16x1xf32> to vector<16x32xf32>
    %120 = arith.mulf %110, %119 : vector<16x32xf32>
    %121 = vector.broadcast %102 : vector<1x32xf32> to vector<16x32xf32>
    %122 = arith.mulf %120, %121 : vector<16x32xf32>
    %123 = vector.broadcast %104 : vector<1x32xf32> to vector<16x32xf32>
    %124 = arith.addf %122, %123 : vector<16x32xf32>
    %c0_48 = arith.constant 0 : index
    %c0_49 = arith.constant 0 : index
    %c0_50 = arith.constant 0 : index
    %125 = vector.load %arg11[%c0_48, %c0_49, %c0_50] : memref<1x32x64xf32, #tpu.memory_space<vmem>>, vector<1x32x64xf32>
    %126 = vector.shape_cast %125 : vector<1x32x64xf32> to vector<32x64xf32>
    %cst_51 = arith.constant dense<0.000000e+00> : vector<16x64xf32>
    %127 = tpu.matmul %124, %126, %cst_51 {dimension_numbers = #tpu.dot_dimension_numbers<[1], [0], [0], [1], [0, 0, 1, 1], [], []>} : vector<16x32xf32>, vector<32x64xf32>, vector<16x64xf32> -> vector<16x64xf32>
    %c0_52 = arith.constant 0 : index
    %c0_53 = arith.constant 0 : index
    %c0_54 = arith.constant 0 : index
    %128 = vector.load %arg12[%c0_52, %c0_53, %c0_54] : memref<1x1x64xf32, #tpu.memory_space<vmem>>, vector<1x1x64xf32>
    %129 = vector.shape_cast %128 : vector<1x1x64xf32> to vector<1x64xf32>
    %130 = vector.broadcast %129 : vector<1x64xf32> to vector<16x64xf32>
    %131 = arith.addf %127, %130 : vector<16x64xf32>
    %cst_55 = arith.constant 5.000000e-01 : f32
    %132 = vector.broadcast %cst_55 : f32 to vector<16x64xf32>
    %133 = arith.mulf %132, %131 : vector<16x64xf32>
    %cst_56 = arith.constant 0.707106769 : f32
    %134 = vector.broadcast %cst_56 : f32 to vector<16x64xf32>
    %135 = arith.mulf %131, %134 : vector<16x64xf32>
    %136 = math.erf %135 : vector<16x64xf32>
    %cst_57 = arith.constant 1.000000e+00 : f32
    %137 = vector.broadcast %cst_57 : f32 to vector<16x64xf32>
    %138 = arith.addf %137, %136 : vector<16x64xf32>
    %139 = arith.mulf %133, %138 : vector<16x64xf32>
    %c0_58 = arith.constant 0 : index
    %c0_59 = arith.constant 0 : index
    %c0_60 = arith.constant 0 : index
    %140 = vector.load %arg13[%c0_58, %c0_59, %c0_60] : memref<1x64x32xf32, #tpu.memory_space<vmem>>, vector<1x64x32xf32>
    %141 = vector.shape_cast %140 : vector<1x64x32xf32> to vector<64x32xf32>
    %cst_61 = arith.constant dense<0.000000e+00> : vector<16x32xf32>
    %142 = tpu.matmul %139, %141, %cst_61 {dimension_numbers = #tpu.dot_dimension_numbers<[1], [0], [0], [1], [0, 0, 1, 1], [], []>} : vector<16x64xf32>, vector<64x32xf32>, vector<16x32xf32> -> vector<16x32xf32>
    %c0_62 = arith.constant 0 : index
    %c0_63 = arith.constant 0 : index
    %c0_64 = arith.constant 0 : index
    %143 = vector.load %arg14[%c0_62, %c0_63, %c0_64] : memref<1x1x32xf32, #tpu.memory_space<vmem>>, vector<1x1x32xf32>
    %144 = vector.shape_cast %143 : vector<1x1x32xf32> to vector<1x32xf32>
    %145 = vector.broadcast %144 : vector<1x32xf32> to vector<16x32xf32>
    %146 = arith.addf %142, %145 : vector<16x32xf32>
    %147 = arith.addf %146, %124 : vector<16x32xf32>
    %c0_65 = arith.constant 0 : index
    %c0_66 = arith.constant 0 : index
    %c0_67 = arith.constant 0 : index
    %148 = vector.load %arg15[%c0_65, %c0_66, %c0_67] : memref<1x1x32xf32, #tpu.memory_space<vmem>>, vector<1x1x32xf32>
    %149 = vector.shape_cast %148 : vector<1x1x32xf32> to vector<1x32xf32>
    %c0_68 = arith.constant 0 : index
    %c0_69 = arith.constant 0 : index
    %c0_70 = arith.constant 0 : index
    %150 = vector.load %arg16[%c0_68, %c0_69, %c0_70] : memref<1x1x32xf32, #tpu.memory_space<vmem>>, vector<1x1x32xf32>
    %151 = vector.shape_cast %150 : vector<1x1x32xf32> to vector<1x32xf32>
    %cst_71 = arith.constant dense<0.000000e+00> : vector<16xf32>
    %152 = vector.multi_reduction <add>, %147, %cst_71 [1] : vector<16x32xf32> to vector<16xf32>
    %153 = vector.shape_cast %152 : vector<16xf32> to vector<16x1xf32>
    %cst_72 = arith.constant 3.200000e+01 : f32
    %154 = vector.broadcast %cst_72 : f32 to vector<16x1xf32>
    %155 = arith.divf %153, %154 : vector<16x1xf32>
    %156 = vector.broadcast %155 : vector<16x1xf32> to vector<16x32xf32>
    %157 = arith.subf %147, %156 : vector<16x32xf32>
    %158 = arith.mulf %157, %157 : vector<16x32xf32>
    %cst_73 = arith.constant dense<0.000000e+00> : vector<16xf32>
    %159 = vector.multi_reduction <add>, %158, %cst_73 [1] : vector<16x32xf32> to vector<16xf32>
    %160 = vector.shape_cast %159 : vector<16xf32> to vector<16x1xf32>
    %cst_74 = arith.constant 3.200000e+01 : f32
    %161 = vector.broadcast %cst_74 : f32 to vector<16x1xf32>
    %162 = arith.divf %160, %161 : vector<16x1xf32>
    %cst_75 = arith.constant 9.99999996E-13 : f32
    %163 = vector.broadcast %cst_75 : f32 to vector<16x1xf32>
    %164 = arith.addf %162, %163 : vector<16x1xf32>
    %165 = math.rsqrt %164 : vector<16x1xf32>
    %166 = vector.broadcast %165 : vector<16x1xf32> to vector<16x32xf32>
    %167 = arith.mulf %157, %166 : vector<16x32xf32>
    %168 = vector.broadcast %149 : vector<1x32xf32> to vector<16x32xf32>
    %169 = arith.mulf %167, %168 : vector<16x32xf32>
    %170 = vector.broadcast %151 : vector<1x32xf32> to vector<16x32xf32>
    %171 = arith.addf %169, %170 : vector<16x32xf32>
    %c0_76 = arith.constant 0 : index
    %c0_77 = arith.constant 0 : index
    %172 = vector.load %arg19[%c0_76, %c0_77] : memref<16x32xf32, #tpu.memory_space<vmem>>, vector<16x32xf32>
    tpu.vector_store %arg19[%c0_76, %c0_77], %171 {strides = array<i32>} : memref<16x32xf32, #tpu.memory_space<vmem>>, vector<16x32xf32>,
    %c1_i32 = arith.constant 1 : i32
    %173 = arith.cmpi eq, %arg0, %c1_i32 : i32
    %174 = arith.extui %173 : i1 to i32
    %c0_i32_78 = arith.constant 0 : i32
    %175 = arith.cmpi ne, %174, %c0_i32_78 : i32
    scf.if %175 {
      %176 = vector.extract_strided_slice %171 {offsets = [0, 0], sizes = [1, 32], strides = [1, 1]} : vector<16x32xf32> to vector<1x32xf32>
      %177 = vector.extract_strided_slice %171 {offsets = [8, 0], sizes = [1, 32], strides = [1, 1]} : vector<16x32xf32> to vector<1x32xf32>
      %178 = tpu.concatenate %176, %177 in 0 : vector<1x32xf32>, vector<1x32xf32> -> vector<2x32xf32>
      %c0_79 = arith.constant 0 : index
      %c0_80 = arith.constant 0 : index
      %179 = vector.load %arg17[%c0_79, %c0_80] : memref<32x32xf32, #tpu.memory_space<vmem>>, vector<32x32xf32>
      %cst_81 = arith.constant dense<0.000000e+00> : vector<2x32xf32>
      %180 = tpu.matmul %178, %179, %cst_81 {dimension_numbers = #tpu.dot_dimension_numbers<[1], [0], [0], [1], [0, 0, 1, 1], [], []>} : vector<2x32xf32>, vector<32x32xf32>, vector<2x32xf32> -> vector<2x32xf32>
      %c0_82 = arith.constant 0 : index
      %c0_83 = arith.constant 0 : index
      %181 = vector.load %arg18[%c0_82, %c0_83] : memref<1x32xf32, #tpu.memory_space<vmem>>, vector<1x32xf32>
      %182 = vector.broadcast %181 : vector<1x32xf32> to vector<2x32xf32>
      %183 = arith.addf %180, %182 : vector<2x32xf32>
      %184 = math.tanh %183 : vector<2x32xf32>
      %c0_84 = arith.constant 0 : index
      %c0_85 = arith.constant 0 : index
      %185 = vector.load %arg20[%c0_84, %c0_85] : memref<2x32xf32, #tpu.memory_space<vmem>>, vector<2x32xf32>
      tpu.vector_store %arg20[%c0_84, %c0_85], %184 {strides = array<i32>} : memref<2x32xf32, #tpu.memory_space<vmem>>, vector<2x32xf32>,
    } else {
    }
    return
  }
  func.func @transform_0(%arg0: i32) -> (i32, i32) {
    %c0_i32 = arith.constant 0 : i32
    %c0_i32_0 = arith.constant 0 : i32
    %c0_i32_1 = arith.constant 0 : i32
    return %c0_i32, %c0_i32_0 : i32, i32
  }
  func.func @transform_1(%arg0: i32) -> (i32, i32) {
    %c0_i32 = arith.constant 0 : i32
    %c0_i32_0 = arith.constant 0 : i32
    %c0_i32_1 = arith.constant 0 : i32
    return %c0_i32, %c0_i32_0 : i32, i32
  }
  func.func @transform_2(%arg0: i32) -> (i32, i32) {
    %c0_i32 = arith.constant 0 : i32
    %c0_i32_0 = arith.constant 0 : i32
    %c0_i32_1 = arith.constant 0 : i32
    return %c0_i32, %c0_i32_0 : i32, i32
  }
  func.func @transform_3(%arg0: i32) -> (i32, i32) {
    %c0_i32 = arith.constant 0 : i32
    %c0_i32_0 = arith.constant 0 : i32
    %c0_i32_1 = arith.constant 0 : i32
    return %c0_i32, %c0_i32_0 : i32, i32
  }
  func.func @transform_4(%arg0: i32) -> (i32, i32, i32) {
    %c0_i32 = arith.constant 0 : i32
    %c0_i32_0 = arith.constant 0 : i32
    %c0_i32_1 = arith.constant 0 : i32
    return %arg0, %c0_i32, %c0_i32_0 : i32, i32, i32
  }
  func.func @transform_5(%arg0: i32) -> (i32, i32, i32) {
    %c0_i32 = arith.constant 0 : i32
    %c0_i32_0 = arith.constant 0 : i32
    %c0_i32_1 = arith.constant 0 : i32
    return %arg0, %c0_i32, %c0_i32_0 : i32, i32, i32
  }
  func.func @transform_6(%arg0: i32) -> (i32, i32, i32) {
    %c0_i32 = arith.constant 0 : i32
    %c0_i32_0 = arith.constant 0 : i32
    %c0_i32_1 = arith.constant 0 : i32
    return %arg0, %c0_i32, %c0_i32_0 : i32, i32, i32
  }
  func.func @transform_7(%arg0: i32) -> (i32, i32, i32) {
    %c0_i32 = arith.constant 0 : i32
    %c0_i32_0 = arith.constant 0 : i32
    %c0_i32_1 = arith.constant 0 : i32
    return %arg0, %c0_i32, %c0_i32_0 : i32, i32, i32
  }
  func.func @transform_8(%arg0: i32) -> (i32, i32, i32) {
    %c0_i32 = arith.constant 0 : i32
    %c0_i32_0 = arith.constant 0 : i32
    %c0_i32_1 = arith.constant 0 : i32
    return %arg0, %c0_i32, %c0_i32_0 : i32, i32, i32
  }
  func.func @transform_9(%arg0: i32) -> (i32, i32, i32) {
    %c0_i32 = arith.constant 0 : i32
    %c0_i32_0 = arith.constant 0 : i32
    %c0_i32_1 = arith.constant 0 : i32
    return %arg0, %c0_i32, %c0_i32_0 : i32, i32, i32
  }
  func.func @transform_10(%arg0: i32) -> (i32, i32, i32) {
    %c0_i32 = arith.constant 0 : i32
    %c0_i32_0 = arith.constant 0 : i32
    %c0_i32_1 = arith.constant 0 : i32
    return %arg0, %c0_i32, %c0_i32_0 : i32, i32, i32
  }
  func.func @transform_11(%arg0: i32) -> (i32, i32, i32) {
    %c0_i32 = arith.constant 0 : i32
    %c0_i32_0 = arith.constant 0 : i32
    %c0_i32_1 = arith.constant 0 : i32
    return %arg0, %c0_i32, %c0_i32_0 : i32, i32, i32
  }
  func.func @transform_12(%arg0: i32) -> (i32, i32, i32) {
    %c0_i32 = arith.constant 0 : i32
    %c0_i32_0 = arith.constant 0 : i32
    %c0_i32_1 = arith.constant 0 : i32
    return %arg0, %c0_i32, %c0_i32_0 : i32, i32, i32
  }
  func.func @transform_13(%arg0: i32) -> (i32, i32, i32) {
    %c0_i32 = arith.constant 0 : i32
    %c0_i32_0 = arith.constant 0 : i32
    %c0_i32_1 = arith.constant 0 : i32
    return %arg0, %c0_i32, %c0_i32_0 : i32, i32, i32
  }
  func.func @transform_14(%arg0: i32) -> (i32, i32, i32) {
    %c0_i32 = arith.constant 0 : i32
    %c0_i32_0 = arith.constant 0 : i32
    %c0_i32_1 = arith.constant 0 : i32
    return %arg0, %c0_i32, %c0_i32_0 : i32, i32, i32
  }
  func.func @transform_15(%arg0: i32) -> (i32, i32, i32) {
    %c0_i32 = arith.constant 0 : i32
    %c0_i32_0 = arith.constant 0 : i32
    %c0_i32_1 = arith.constant 0 : i32
    return %arg0, %c0_i32, %c0_i32_0 : i32, i32, i32
  }
  func.func @transform_16(%arg0: i32) -> (i32, i32) {
    %c0_i32 = arith.constant 0 : i32
    %c0_i32_0 = arith.constant 0 : i32
    %c0_i32_1 = arith.constant 0 : i32
    return %c0_i32, %c0_i32_0 : i32, i32
  }
  func.func @transform_17(%arg0: i32) -> (i32, i32) {
    %c0_i32 = arith.constant 0 : i32
    %c0_i32_0 = arith.constant 0 : i32
    %c0_i32_1 = arith.constant 0 : i32
    return %c0_i32, %c0_i32_0 : i32, i32
  }
  func.func @transform_18(%arg0: i32) -> (i32, i32) {
    %c0_i32 = arith.constant 0 : i32
    %c0_i32_0 = arith.constant 0 : i32
    %c0_i32_1 = arith.constant 0 : i32
    return %c0_i32, %c0_i32_0 : i32, i32
  }
  func.func @transform_19(%arg0: i32) -> (i32, i32) {
    %c0_i32 = arith.constant 0 : i32
    %c0_i32_0 = arith.constant 0 : i32
    %c0_i32_1 = arith.constant 0 : i32
    return %c0_i32, %c0_i32_0 : i32, i32
  }
}

</mosaic_0001>

<llo_original>
// kernel: bert_encoder_forward.1
$region0: #{bert_encoder_forward.1}
  #allocation0 [shape = 'u32[]', space=smem, size = 0x4, offset = 0x4, fixed_abs, tag = 'smem constant byte address 0x4 - core index']
  #allocation1 [shape = 'u32[144,128]{1,0:T(1,128)}', space=vmem, size = 0x12000, scoped, tag = 'internal scratch']
  %s0 = inlined_call_operand.vmem [shape: f32[16,32], index: 0, kind: input, shape index: {}]
  %s1 = inlined_call_operand.vmem [shape: f32[2,8], index: 1, kind: input, shape index: {}]
  %s2 = inlined_call_operand.vmem [shape: f32[1,32], index: 2, kind: input, shape index: {}]
  %s3 = inlined_call_operand.vmem [shape: f32[1,32], index: 3, kind: input, shape index: {}]
  %s4 = inlined_call_operand.vmem [shape: f32[2,32,96], index: 4, kind: input, shape index: {}]
  %s5 = inlined_call_operand.vmem [shape: f32[2,1,96], index: 5, kind: input, shape index: {}]
  %s6 = inlined_call_operand.vmem [shape: f32[2,32,32], index: 6, kind: input, shape index: {}]
  %s7 = inlined_call_operand.vmem [shape: f32[2,1,32], index: 7, kind: input, shape index: {}]
  %s8 = inlined_call_operand.vmem [shape: f32[2,1,32], index: 8, kind: input, shape index: {}]
  %s9 = inlined_call_operand.vmem [shape: f32[2,1,32], index: 9, kind: input, shape index: {}]
  %s10 = inlined_call_operand.vmem [shape: f32[2,32,64], index: 10, kind: input, shape index: {}]
  %s11 = inlined_call_operand.vmem [shape: f32[2,1,64], index: 11, kind: input, shape index: {}]
  %s12 = inlined_call_operand.vmem [shape: f32[2,64,32], index: 12, kind: input, shape index: {}]
  %s13 = inlined_call_operand.vmem [shape: f32[2,1,32], index: 13, kind: input, shape index: {}]
  %s14 = inlined_call_operand.vmem [shape: f32[2,1,32], index: 14, kind: input, shape index: {}]
  %s15 = inlined_call_operand.vmem [shape: f32[2,1,32], index: 15, kind: input, shape index: {}]
  %s16 = inlined_call_operand.vmem [shape: f32[32,32], index: 16, kind: input, shape index: {}]
  %s17 = inlined_call_operand.vmem [shape: f32[1,32], index: 17, kind: input, shape index: {}]
  %s18 = inlined_call_operand.hbm [shape: f32[16,32], index: 18, kind: output, shape index: {0}]
  %s19 = inlined_call_operand.hbm [shape: f32[2,32], index: 19, kind: output, shape index: {1}]
  %20 = xla_tuple %s18, %s19
  %s21 = sld [smem:[#allocation0]]
  $region121: #{bert_encoder_forward.1} parent=0
    _
  %s23 = ssub.s32 1, %s21
  %s24 = scalar_select 0, %s23, %s21
  $region1: #{bert_encoder_forward.1} parent=0
    #allocation2 [shape = 'u8[8192]{0}', space=vmem, size = 0x2000, scoped, tag = 'output window, operand 0, single buffered']
    #allocation3 [shape = 's32[2]{0}', space=sflag, size = 0x8, scoped, tag = 'scoped memory for bert_encoder_forward.1']
    #allocation4 [shape = 'u8[1024]{0}', space=vmem, size = 0x400, scoped, tag = 'output window, operand 1, single buffered']
    #allocation5 [shape = 's32[1]{0}', space=sflag, size = 0x4, scoped, tag = 'scoped memory for bert_encoder_forward.1']
    %25 = vsyncpa [#allocation3], 0
    %26 = vsyncpa [#allocation5], 0
    loop: start=0, step=1, limit=4
    $region2: #{bert_encoder_forward.1} parent=1 // loop_pre_header
      _
    $region3: #{bert_encoder_forward.1} parent=1 // loop_header
      %s28 = sphi 0, %s32
      %p29 = scmp.ge.s32.totalorder %s28, 4
      %s36 = sphi 0, %s36
      %s38 = sphi 0, %s36
      %s39 = sphi 0, %s38
      %s53 = sphi 0, %s39
      %s57 = sphi 0, %s57
      %s59 = sphi 0, %s57
      %s60 = sphi 0, %s59
      %s74 = sphi 0, %s60
      %s78 = sphi 0, %s78
      %s80 = sphi 0, %s78
      %s81 = sphi 0, %s80
      %s95 = sphi 0, %s81
      %s99 = sphi 0, %s99
      %s101 = sphi 0, %s99
      %s102 = sphi 0, %s101
      %s116 = sphi 0, %s102
      %s122 = sphi 0, %s124
      %s125 = sphi 0, %s122
      %s126 = sphi 0, %s125
      %s142 = sphi 0, %s126
      %s148 = sphi 0, %s150
      %s151 = sphi 0, %s148
      %s152 = sphi 0, %s151
      %s168 = sphi 0, %s152
      %s174 = sphi 0, %s176
      %s177 = sphi 0, %s174
      %s178 = sphi 0, %s177
      %s194 = sphi 0, %s178
      %s200 = sphi 0, %s202
      %s203 = sphi 0, %s200
      %s204 = sphi 0, %s203
      %s220 = sphi 0, %s204
      %s226 = sphi 0, %s228
      %s229 = sphi 0, %s226
      %s230 = sphi 0, %s229
      %s246 = sphi 0, %s230
      %s252 = sphi 0, %s254
      %s255 = sphi 0, %s252
      %s256 = sphi 0, %s255
      %s272 = sphi 0, %s256
      %s278 = sphi 0, %s280
      %s281 = sphi 0, %s278
      %s282 = sphi 0, %s281
      %s298 = sphi 0, %s282
      %s304 = sphi 0, %s306
      %s307 = sphi 0, %s304
      %s308 = sphi 0, %s307
      %s324 = sphi 0, %s308
      %s330 = sphi 0, %s332
      %s333 = sphi 0, %s330
      %s334 = sphi 0, %s333
      %s350 = sphi 0, %s334
      %s356 = sphi 0, %s358
      %s359 = sphi 0, %s356
      %s360 = sphi 0, %s359
      %s376 = sphi 0, %s360
      %s382 = sphi 0, %s384
      %s385 = sphi 0, %s382
      %s386 = sphi 0, %s385
      %s402 = sphi 0, %s386
      %s408 = sphi 0, %s410
      %s411 = sphi 0, %s408
      %s412 = sphi 0, %s411
      %s428 = sphi 0, %s412
      %s432 = sphi 0, %s432
      %s434 = sphi 0, %s432
      %s435 = sphi 0, %s434
      %s449 = sphi 0, %s435
      %s453 = sphi 0, %s453
      %s455 = sphi 0, %s453
      %s456 = sphi 0, %s455
      %s470 = sphi 0, %s456
      %s474 = sphi 0, %s474
      %s476 = sphi 0, %s474
      %s477 = sphi 0, %s476
      %s491 = sphi 0, %s477
      %s495 = sphi 0, %s495
      %s497 = sphi 0, %s495
      %s498 = sphi 0, %s497
      %s512 = sphi 0, %s498
    $region4: #{bert_encoder_forward.1} parent=1 // loop_header_branch
      %31 = sbr.rel (%p29) target = $region8
    $region5: #{bert_encoder_forward.1} parent=1 // loop_body
      %s33 = ssub.s32 %s28, 1
      %s34 = ssub.s32 %s28, 2
      %s35 = sadd.s32 %s28, 1
      %s37 = sadd.s32 %s36, 1
      %p40 = scmp.eq.s32.totalorder %s28, 1
      %p41 = scmp.ne.s32.totalorder %s36, %s38
      %p42 = scmp.eq.s32.totalorder %s28, 0
      %p43 = por %p41, %p42
      %p44 = scmp.ne.s32.totalorder %s36, %s38
      %p45 = scmp.eq.s32.totalorder %s33, 1
      %p46 = por %p44, %p45
      %p47 = scmp.ne.s32.totalorder %s38, %s39
      %p48 = scmp.eq.s32.totalorder %s33, 0
      %p49 = por %p47, %p48
      %p50 = scmp.ne.s32.totalorder %s38, %s39
      %p51 = scmp.eq.s32.totalorder %s34, 1
      %p52 = por %p50, %p51
      %p54 = scmp.ne.s32.totalorder %s39, %s53
      %p55 = scmp.eq.s32.totalorder %s34, 0
      %p56 = por %p54, %p55
      %s58 = sadd.s32 %s57, 1
      %p61 = scmp.eq.s32.totalorder %s28, 1
      %p62 = scmp.ne.s32.totalorder %s57, %s59
      %p63 = scmp.eq.s32.totalorder %s28, 0
      %p64 = por %p62, %p63
      %p65 = scmp.ne.s32.totalorder %s57, %s59
      %p66 = scmp.eq.s32.totalorder %s33, 1
      %p67 = por %p65, %p66
      %p68 = scmp.ne.s32.totalorder %s59, %s60
      %p69 = scmp.eq.s32.totalorder %s33, 0
      %p70 = por %p68, %p69
      %p71 = scmp.ne.s32.totalorder %s59, %s60
      %p72 = scmp.eq.s32.totalorder %s34, 1
      %p73 = por %p71, %p72
      %p75 = scmp.ne.s32.totalorder %s60, %s74
      %p76 = scmp.eq.s32.totalorder %s34, 0
      %p77 = por %p75, %p76
      %s79 = sadd.s32 %s78, 1
      %p82 = scmp.eq.s32.totalorder %s28, 1
      %p83 = scmp.ne.s32.totalorder %s78, %s80
      %p84 = scmp.eq.s32.totalorder %s28, 0
      %p85 = por %p83, %p84
      %p86 = scmp.ne.s32.totalorder %s78, %s80
      %p87 = scmp.eq.s32.totalorder %s33, 1
      %p88 = por %p86, %p87
      %p89 = scmp.ne.s32.totalorder %s80, %s81
      %p90 = scmp.eq.s32.totalorder %s33, 0
      %p91 = por %p89, %p90
      %p92 = scmp.ne.s32.totalorder %s80, %s81
      %p93 = scmp.eq.s32.totalorder %s34, 1
      %p94 = por %p92, %p93
      %p96 = scmp.ne.s32.totalorder %s81, %s95
      %p97 = scmp.eq.s32.totalorder %s34, 0
      %p98 = por %p96, %p97
      %s100 = sadd.s32 %s99, 1
      %p103 = scmp.eq.s32.totalorder %s28, 1
      %p104 = scmp.ne.s32.totalorder %s99, %s101
      %p105 = scmp.eq.s32.totalorder %s28, 0
      %p106 = por %p104, %p105
      %p107 = scmp.ne.s32.totalorder %s99, %s101
      %p108 = scmp.eq.s32.totalorder %s33, 1
      %p109 = por %p107, %p108
      %p110 = scmp.ne.s32.totalorder %s101, %s102
      %p111 = scmp.eq.s32.totalorder %s33, 0
      %p112 = por %p110, %p111
      %p113 = scmp.ne.s32.totalorder %s101, %s102
      %p114 = scmp.eq.s32.totalorder %s34, 1
      %p115 = por %p113, %p114
      %p117 = scmp.ne.s32.totalorder %s102, %s116
      %p118 = scmp.eq.s32.totalorder %s34, 0
      %p119 = por %p117, %p118
      %s120 = ssub.s32 %s28, %s35
      %p121 = scmp.eq.s32.totalorder %s120, 0
      %s123 = sadd.s32 %s122, 1
      %s124 = scalar_select %p121, %s122, %s123
      %p127 = pneg %p121
      %p128 = scmp.eq.s32.totalorder %s28, 1
      %p129 = por %p127, %p128
      %p130 = scmp.ne.s32.totalorder %s122, %s125
      %p131 = scmp.eq.s32.totalorder %s28, 0
      %p132 = por %p130, %p131
      %p133 = scmp.ne.s32.totalorder %s122, %s125
      %p134 = scmp.eq.s32.totalorder %s33, 1
      %p135 = por %p133, %p134
      %p136 = scmp.ne.s32.totalorder %s125, %s126
      %p137 = scmp.eq.s32.totalorder %s33, 0
      %p138 = por %p136, %p137
      %p139 = scmp.ne.s32.totalorder %s125, %s126
      %p140 = scmp.eq.s32.totalorder %s34, 1
      %p141 = por %p139, %p140
      %p143 = scmp.ne.s32.totalorder %s126, %s142
      %p144 = scmp.eq.s32.totalorder %s34, 0
      %p145 = por %p143, %p144
      %s146 = ssub.s32 %s28, %s35
      %p147 = scmp.eq.s32.totalorder %s146, 0
      %s149 = sadd.s32 %s148, 1
      %s150 = scalar_select %p147, %s148, %s149
      %p153 = pneg %p147
      %p154 = scmp.eq.s32.totalorder %s28, 1
      %p155 = por %p153, %p154
      %p156 = scmp.ne.s32.totalorder %s148, %s151
      %p157 = scmp.eq.s32.totalorder %s28, 0
      %p158 = por %p156, %p157
      %p159 = scmp.ne.s32.totalorder %s148, %s151
      %p160 = scmp.eq.s32.totalorder %s33, 1
      %p161 = por %p159, %p160
      %p162 = scmp.ne.s32.totalorder %s151, %s152
      %p163 = scmp.eq.s32.totalorder %s33, 0
      %p164 = por %p162, %p163
      %p165 = scmp.ne.s32.totalorder %s151, %s152
      %p166 = scmp.eq.s32.totalorder %s34, 1
      %p167 = por %p165, %p166
      %p169 = scmp.ne.s32.totalorder %s152, %s168
      %p170 = scmp.eq.s32.totalorder %s34, 0
      %p171 = por %p169, %p170
      %s172 = ssub.s32 %s28, %s35
      %p173 = scmp.eq.s32.totalorder %s172, 0
      %s175 = sadd.s32 %s174, 1
      %s176 = scalar_select %p173, %s174, %s175
      %p179 = pneg %p173
      %p180 = scmp.eq.s32.totalorder %s28, 1
      %p181 = por %p179, %p180
      %p182 = scmp.ne.s32.totalorder %s174, %s177
      %p183 = scmp.eq.s32.totalorder %s28, 0
      %p184 = por %p182, %p183
      %p185 = scmp.ne.s32.totalorder %s174, %s177
      %p186 = scmp.eq.s32.totalorder %s33, 1
      %p187 = por %p185, %p186
      %p188 = scmp.ne.s32.totalorder %s177, %s178
      %p189 = scmp.eq.s32.totalorder %s33, 0
      %p190 = por %p188, %p189
      %p191 = scmp.ne.s32.totalorder %s177, %s178
      %p192 = scmp.eq.s32.totalorder %s34, 1
      %p193 = por %p191, %p192
      %p195 = scmp.ne.s32.totalorder %s178, %s194
      %p196 = scmp.eq.s32.totalorder %s34, 0
      %p197 = por %p195, %p196
      %s198 = ssub.s32 %s28, %s35
      %p199 = scmp.eq.s32.totalorder %s198, 0
      %s201 = sadd.s32 %s200, 1
      %s202 = scalar_select %p199, %s200, %s201
      %p205 = pneg %p199
      %p206 = scmp.eq.s32.totalorder %s28, 1
      %p207 = por %p205, %p206
      %p208 = scmp.ne.s32.totalorder %s200, %s203
      %p209 = scmp.eq.s32.totalorder %s28, 0
      %p210 = por %p208, %p209
      %p211 = scmp.ne.s32.totalorder %s200, %s203
      %p212 = scmp.eq.s32.totalorder %s33, 1
      %p213 = por %p211, %p212
      %p214 = scmp.ne.s32.totalorder %s203, %s204
      %p215 = scmp.eq.s32.totalorder %s33, 0
      %p216 = por %p214, %p215
      %p217 = scmp.ne.s32.totalorder %s203, %s204
      %p218 = scmp.eq.s32.totalorder %s34, 1
      %p219 = por %p217, %p218
      %p221 = scmp.ne.s32.totalorder %s204, %s220
      %p222 = scmp.eq.s32.totalorder %s34, 0
      %p223 = por %p221, %p222
      %s224 = ssub.s32 %s28, %s35
      %p225 = scmp.eq.s32.totalorder %s224, 0
      %s227 = sadd.s32 %s226, 1
      %s228 = scalar_select %p225, %s226, %s227
      %p231 = pneg %p225
      %p232 = scmp.eq.s32.totalorder %s28, 1
      %p233 = por %p231, %p232
      %p234 = scmp.ne.s32.totalorder %s226, %s229
      %p235 = scmp.eq.s32.totalorder %s28, 0
      %p236 = por %p234, %p235
      %p237 = scmp.ne.s32.totalorder %s226, %s229
      %p238 = scmp.eq.s32.totalorder %s33, 1
      %p239 = por %p237, %p238
      %p240 = scmp.ne.s32.totalorder %s229, %s230
      %p241 = scmp.eq.s32.totalorder %s33, 0
      %p242 = por %p240, %p241
      %p243 = scmp.ne.s32.totalorder %s229, %s230
      %p244 = scmp.eq.s32.totalorder %s34, 1
      %p245 = por %p243, %p244
      %p247 = scmp.ne.s32.totalorder %s230, %s246
      %p248 = scmp.eq.s32.totalorder %s34, 0
      %p249 = por %p247, %p248
      %s250 = ssub.s32 %s28, %s35
      %p251 = scmp.eq.s32.totalorder %s250, 0
      %s253 = sadd.s32 %s252, 1
      %s254 = scalar_select %p251, %s252, %s253
      %p257 = pneg %p251
      %p258 = scmp.eq.s32.totalorder %s28, 1
      %p259 = por %p257, %p258
      %p260 = scmp.ne.s32.totalorder %s252, %s255
      %p261 = scmp.eq.s32.totalorder %s28, 0
      %p262 = por %p260, %p261
      %p263 = scmp.ne.s32.totalorder %s252, %s255
      %p264 = scmp.eq.s32.totalorder %s33, 1
      %p265 = por %p263, %p264
      %p266 = scmp.ne.s32.totalorder %s255, %s256
      %p267 = scmp.eq.s32.totalorder %s33, 0
      %p268 = por %p266, %p267
      %p269 = scmp.ne.s32.totalorder %s255, %s256
      %p270 = scmp.eq.s32.totalorder %s34, 1
      %p271 = por %p269, %p270
      %p273 = scmp.ne.s32.totalorder %s256, %s272
      %p274 = scmp.eq.s32.totalorder %s34, 0
      %p275 = por %p273, %p274
      %s276 = ssub.s32 %s28, %s35
      %p277 = scmp.eq.s32.totalorder %s276, 0
      %s279 = sadd.s32 %s278, 1
      %s280 = scalar_select %p277, %s278, %s279
      %p283 = pneg %p277
      %p284 = scmp.eq.s32.totalorder %s28, 1
      %p285 = por %p283, %p284
      %p286 = scmp.ne.s32.totalorder %s278, %s281
      %p287 = scmp.eq.s32.totalorder %s28, 0
      %p288 = por %p286, %p287
      %p289 = scmp.ne.s32.totalorder %s278, %s281
      %p290 = scmp.eq.s32.totalorder %s33, 1
      %p291 = por %p289, %p290
      %p292 = scmp.ne.s32.totalorder %s281, %s282
      %p293 = scmp.eq.s32.totalorder %s33, 0
      %p294 = por %p292, %p293
      %p295 = scmp.ne.s32.totalorder %s281, %s282
      %p296 = scmp.eq.s32.totalorder %s34, 1
      %p297 = por %p295, %p296
      %p299 = scmp.ne.s32.totalorder %s282, %s298
      %p300 = scmp.eq.s32.totalorder %s34, 0
      %p301 = por %p299, %p300
      %s302 = ssub.s32 %s28, %s35
      %p303 = scmp.eq.s32.totalorder %s302, 0
      %s305 = sadd.s32 %s304, 1
      %s306 = scalar_select %p303, %s304, %s305
      %p309 = pneg %p303
      %p310 = scmp.eq.s32.totalorder %s28, 1
      %p311 = por %p309, %p310
      %p312 = scmp.ne.s32.totalorder %s304, %s307
      %p313 = scmp.eq.s32.totalorder %s28, 0
      %p314 = por %p312, %p313
      %p315 = scmp.ne.s32.totalorder %s304, %s307
      %p316 = scmp.eq.s32.totalorder %s33, 1
      %p317 = por %p315, %p316
      %p318 = scmp.ne.s32.totalorder %s307, %s308
      %p319 = scmp.eq.s32.totalorder %s33, 0
      %p320 = por %p318, %p319
      %p321 = scmp.ne.s32.totalorder %s307, %s308
      %p322 = scmp.eq.s32.totalorder %s34, 1
      %p323 = por %p321, %p322
      %p325 = scmp.ne.s32.totalorder %s308, %s324
      %p326 = scmp.eq.s32.totalorder %s34, 0
      %p327 = por %p325, %p326
      %s328 = ssub.s32 %s28, %s35
      %p329 = scmp.eq.s32.totalorder %s328, 0
      %s331 = sadd.s32 %s330, 1
      %s332 = scalar_select %p329, %s330, %s331
      %p335 = pneg %p329
      %p336 = scmp.eq.s32.totalorder %s28, 1
      %p337 = por %p335, %p336
      %p338 = scmp.ne.s32.totalorder %s330, %s333
      %p339 = scmp.eq.s32.totalorder %s28, 0
      %p340 = por %p338, %p339
      %p341 = scmp.ne.s32.totalorder %s330, %s333
      %p342 = scmp.eq.s32.totalorder %s33, 1
      %p343 = por %p341, %p342
      %p344 = scmp.ne.s32.totalorder %s333, %s334
      %p345 = scmp.eq.s32.totalorder %s33, 0
      %p346 = por %p344, %p345
      %p347 = scmp.ne.s32.totalorder %s333, %s334
      %p348 = scmp.eq.s32.totalorder %s34, 1
      %p349 = por %p347, %p348
      %p351 = scmp.ne.s32.totalorder %s334, %s350
      %p352 = scmp.eq.s32.totalorder %s34, 0
      %p353 = por %p351, %p352
      %s354 = ssub.s32 %s28, %s35
      %p355 = scmp.eq.s32.totalorder %s354, 0
      %s357 = sadd.s32 %s356, 1
      %s358 = scalar_select %p355, %s356, %s357
      %p361 = pneg %p355
      %p362 = scmp.eq.s32.totalorder %s28, 1
      %p363 = por %p361, %p362
      %p364 = scmp.ne.s32.totalorder %s356, %s359
      %p365 = scmp.eq.s32.totalorder %s28, 0
      %p366 = por %p364, %p365
      %p367 = scmp.ne.s32.totalorder %s356, %s359
      %p368 = scmp.eq.s32.totalorder %s33, 1
      %p369 = por %p367, %p368
      %p370 = scmp.ne.s32.totalorder %s359, %s360
      %p371 = scmp.eq.s32.totalorder %s33, 0
      %p372 = por %p370, %p371
      %p373 = scmp.ne.s32.totalorder %s359, %s360
      %p374 = scmp.eq.s32.totalorder %s34, 1
      %p375 = por %p373, %p374
      %p377 = scmp.ne.s32.totalorder %s360, %s376
      %p378 = scmp.eq.s32.totalorder %s34, 0
      %p379 = por %p377, %p378
      %s380 = ssub.s32 %s28, %s35
      %p381 = scmp.eq.s32.totalorder %s380, 0
      %s383 = sadd.s32 %s382, 1
      %s384 = scalar_select %p381, %s382, %s383
      %p387 = pneg %p381
      %p388 = scmp.eq.s32.totalorder %s28, 1
      %p389 = por %p387, %p388
      %p390 = scmp.ne.s32.totalorder %s382, %s385
      %p391 = scmp.eq.s32.totalorder %s28, 0
      %p392 = por %p390, %p391
      %p393 = scmp.ne.s32.totalorder %s382, %s385
      %p394 = scmp.eq.s32.totalorder %s33, 1
      %p395 = por %p393, %p394
      %p396 = scmp.ne.s32.totalorder %s385, %s386
      %p397 = scmp.eq.s32.totalorder %s33, 0
      %p398 = por %p396, %p397
      %p399 = scmp.ne.s32.totalorder %s385, %s386
      %p400 = scmp.eq.s32.totalorder %s34, 1
      %p401 = por %p399, %p400
      %p403 = scmp.ne.s32.totalorder %s386, %s402
      %p404 = scmp.eq.s32.totalorder %s34, 0
      %p405 = por %p403, %p404
      %s406 = ssub.s32 %s28, %s35
      %p407 = scmp.eq.s32.totalorder %s406, 0
      %s409 = sadd.s32 %s408, 1
      %s410 = scalar_select %p407, %s408, %s409
      %p413 = pneg %p407
      %p414 = scmp.eq.s32.totalorder %s28, 1
      %p415 = por %p413, %p414
      %p416 = scmp.ne.s32.totalorder %s408, %s411
      %p417 = scmp.eq.s32.totalorder %s28, 0
      %p418 = por %p416, %p417
      %p419 = scmp.ne.s32.totalorder %s408, %s411
      %p420 = scmp.eq.s32.totalorder %s33, 1
      %p421 = por %p419, %p420
      %p422 = scmp.ne.s32.totalorder %s411, %s412
      %p423 = scmp.eq.s32.totalorder %s33, 0
      %p424 = por %p422, %p423
      %p425 = scmp.ne.s32.totalorder %s411, %s412
      %p426 = scmp.eq.s32.totalorder %s34, 1
      %p427 = por %p425, %p426
      %p429 = scmp.ne.s32.totalorder %s412, %s428
      %p430 = scmp.eq.s32.totalorder %s34, 0
      %p431 = por %p429, %p430
      %s433 = sadd.s32 %s432, 1
      %p436 = scmp.eq.s32.totalorder %s28, 1
      %p437 = scmp.ne.s32.totalorder %s432, %s434
      %p438 = scmp.eq.s32.totalorder %s28, 0
      %p439 = por %p437, %p438
      %p440 = scmp.ne.s32.totalorder %s432, %s434
      %p441 = scmp.eq.s32.totalorder %s33, 1
      %p442 = por %p440, %p441
      %p443 = scmp.ne.s32.totalorder %s434, %s435
      %p444 = scmp.eq.s32.totalorder %s33, 0
      %p445 = por %p443, %p444
      %p446 = scmp.ne.s32.totalorder %s434, %s435
      %p447 = scmp.eq.s32.totalorder %s34, 1
      %p448 = por %p446, %p447
      %p450 = scmp.ne.s32.totalorder %s435, %s449
      %p451 = scmp.eq.s32.totalorder %s34, 0
      %p452 = por %p450, %p451
      %s454 = sadd.s32 %s453, 1
      %p457 = scmp.eq.s32.totalorder %s28, 1
      %p458 = scmp.ne.s32.totalorder %s453, %s455
      %p459 = scmp.eq.s32.totalorder %s28, 0
      %p460 = por %p458, %p459
      %p461 = scmp.ne.s32.totalorder %s453, %s455
      %p462 = scmp.eq.s32.totalorder %s33, 1
      %p463 = por %p461, %p462
      %p464 = scmp.ne.s32.totalorder %s455, %s456
      %p465 = scmp.eq.s32.totalorder %s33, 0
      %p466 = por %p464, %p465
      %p467 = scmp.ne.s32.totalorder %s455, %s456
      %p468 = scmp.eq.s32.totalorder %s34, 1
      %p469 = por %p467, %p468
      %p471 = scmp.ne.s32.totalorder %s456, %s470
      %p472 = scmp.eq.s32.totalorder %s34, 0
      %p473 = por %p471, %p472
      %s475 = sadd.s32 %s474, 1
      %p478 = scmp.eq.s32.totalorder %s28, 1
      %p479 = scmp.ne.s32.totalorder %s474, %s476
      %p480 = scmp.eq.s32.totalorder %s28, 0
      %p481 = por %p479, %p480
      %p482 = scmp.ne.s32.totalorder %s474, %s476
      %p483 = scmp.eq.s32.totalorder %s33, 1
      %p484 = por %p482, %p483
      %p485 = scmp.ne.s32.totalorder %s476, %s477
      %p486 = scmp.eq.s32.totalorder %s33, 0
      %p487 = por %p485, %p486
      %p488 = scmp.ne.s32.totalorder %s476, %s477
      %p489 = scmp.eq.s32.totalorder %s34, 1
      %p490 = por %p488, %p489
      %p492 = scmp.ne.s32.totalorder %s477, %s491
      %p493 = scmp.eq.s32.totalorder %s34, 0
      %p494 = por %p492, %p493
      %s496 = sadd.s32 %s495, 1
      %p499 = scmp.eq.s32.totalorder %s28, 1
      %p500 = scmp.ne.s32.totalorder %s495, %s497
      %p501 = scmp.eq.s32.totalorder %s28, 0
      %p502 = por %p500, %p501
      %p503 = scmp.ne.s32.totalorder %s495, %s497
      %p504 = scmp.eq.s32.totalorder %s33, 1
      %p505 = por %p503, %p504
      %p506 = scmp.ne.s32.totalorder %s497, %s498
      %p507 = scmp.eq.s32.totalorder %s33, 0
      %p508 = por %p506, %p507
      %p509 = scmp.ne.s32.totalorder %s497, %s498
      %p510 = scmp.eq.s32.totalorder %s34, 1
      %p511 = por %p509, %p510
      %p513 = scmp.ne.s32.totalorder %s498, %s512
      %p514 = scmp.eq.s32.totalorder %s34, 0
      %p515 = por %p513, %p514
      %p516 = scmp.le.s32.totalorder 1, %s28
      %p517 = scmp.lt.s32.totalorder %s28, 3
      %p518 = pnand %p516, %p517
      %p519 = pneg %p518
      // Predicated region
      $region9: #{bert_encoder_forward.1} parent=5 // pred_check
        _
      $region10: #{bert_encoder_forward.1} parent=5 // pred_check_branch
        %521 = sbr.rel (%p518) target = $region12
      $region11: #{bert_encoder_forward.1} parent=5 // pred_region
        %s522 = ssub.s32 %s28, 1
        // Predicated region
        $region13: #{bert_encoder_forward.1} parent=11 // pred_check
          %p523 = pneg %p49
        $region14: #{bert_encoder_forward.1} parent=11 // pred_check_branch
          %525 = sbr.rel (%p523) target = $region16
        $region15: #{bert_encoder_forward.1} parent=11 // pred_region
          _
        $region16: #{bert_encoder_forward.1} parent=11 // pred_fallthru
          _
        // Predicated region
        $region17: #{bert_encoder_forward.1} parent=11 // pred_check
          %p526 = pneg %p70
        $region18: #{bert_encoder_forward.1} parent=11 // pred_check_branch
          %528 = sbr.rel (%p526) target = $region20
        $region19: #{bert_encoder_forward.1} parent=11 // pred_region
          _
        $region20: #{bert_encoder_forward.1} parent=11 // pred_fallthru
          _
        // Predicated region
        $region21: #{bert_encoder_forward.1} parent=11 // pred_check
          %p529 = pneg %p91
        $region22: #{bert_encoder_forward.1} parent=11 // pred_check_branch
          %531 = sbr.rel (%p529) target = $region24
        $region23: #{bert_encoder_forward.1} parent=11 // pred_region
          _
        $region24: #{bert_encoder_forward.1} parent=11 // pred_fallthru
          _
        // Predicated region
        $region25: #{bert_encoder_forward.1} parent=11 // pred_check
          %p532 = pneg %p112
        $region26: #{bert_encoder_forward.1} parent=11 // pred_check_branch
          %534 = sbr.rel (%p532) target = $region28
        $region27: #{bert_encoder_forward.1} parent=11 // pred_region
          _
        $region28: #{bert_encoder_forward.1} parent=11 // pred_fallthru
          _
        // Predicated region
        $region29: #{bert_encoder_forward.1} parent=11 // pred_check
          %p535 = pneg %p445
        $region30: #{bert_encoder_forward.1} parent=11 // pred_check_branch
          %537 = sbr.rel (%p535) target = $region32
        $region31: #{bert_encoder_forward.1} parent=11 // pred_region
          _
        $region32: #{bert_encoder_forward.1} parent=11 // pred_fallthru
          _
        // Predicated region
        $region33: #{bert_encoder_forward.1} parent=11 // pred_check
          %p538 = pneg %p466
        $region34: #{bert_encoder_forward.1} parent=11 // pred_check_branch
          %540 = sbr.rel (%p538) target = $region36
        $region35: #{bert_encoder_forward.1} parent=11 // pred_region
          _
        $region36: #{bert_encoder_forward.1} parent=11 // pred_fallthru
          _
      $region12: #{bert_encoder_forward.1} parent=5 // pred_fallthru
        _
      %p541 = scmp.lt.s32.totalorder %s28, 2
      // Predicated region
      $region37: #{bert_encoder_forward.1} parent=5 // pred_check
        %p542 = pneg %p541
      $region38: #{bert_encoder_forward.1} parent=5 // pred_check_branch
        %544 = sbr.rel (%p542) target = $region40
      $region39: #{bert_encoder_forward.1} parent=5 // pred_region
        // Predicated region
        $region41: #{bert_encoder_forward.1} parent=39 // pred_check
          %p545 = pneg %p132
        $region42: #{bert_encoder_forward.1} parent=39 // pred_check_branch
          %547 = sbr.rel (%p545) target = $region44
        $region43: #{bert_encoder_forward.1} parent=39 // pred_region
          %p548 = scmp.lt.s32.totalorder %s28, 1
          %s549 = scalar_select %p548, %s28, 1
          %s550 = smul.addr %s549, 4
          %s551 = smul.addr %s550, 8
          %s552 = scalar_lea.vmem %s4, %s551
        $region44: #{bert_encoder_forward.1} parent=39 // pred_fallthru
          _
        // Predicated region
        $region45: #{bert_encoder_forward.1} parent=39 // pred_check
          %p553 = pneg %p158
        $region46: #{bert_encoder_forward.1} parent=39 // pred_check_branch
          %555 = sbr.rel (%p553) target = $region48
        $region47: #{bert_encoder_forward.1} parent=39 // pred_region
          %p556 = scmp.lt.s32.totalorder %s28, 1
          %s557 = scalar_select %p556, %s28, 1
          %s558 = scalar_lea.vmem %s5, %s557
        $region48: #{bert_encoder_forward.1} parent=39 // pred_fallthru
          _
        // Predicated region
        $region49: #{bert_encoder_forward.1} parent=39 // pred_check
          %p559 = pneg %p184
        $region50: #{bert_encoder_forward.1} parent=39 // pred_check_branch
          %561 = sbr.rel (%p559) target = $region52
        $region51: #{bert_encoder_forward.1} parent=39 // pred_region
          %p562 = scmp.lt.s32.totalorder %s28, 1
          %s563 = scalar_select %p562, %s28, 1
          %s564 = smul.addr %s563, 4
          %s565 = smul.addr %s564, 8
          %s566 = scalar_lea.vmem %s6, %s565
        $region52: #{bert_encoder_forward.1} parent=39 // pred_fallthru
          _
        // Predicated region
        $region53: #{bert_encoder_forward.1} parent=39 // pred_check
          %p567 = pneg %p210
        $region54: #{bert_encoder_forward.1} parent=39 // pred_check_branch
          %569 = sbr.rel (%p567) target = $region56
        $region55: #{bert_encoder_forward.1} parent=39 // pred_region
          %p570 = scmp.lt.s32.totalorder %s28, 1
          %s571 = scalar_select %p570, %s28, 1
          %s572 = scalar_lea.vmem %s7, %s571
        $region56: #{bert_encoder_forward.1} parent=39 // pred_fallthru
          _
        // Predicated region
        $region57: #{bert_encoder_forward.1} parent=39 // pred_check
          %p573 = pneg %p236
        $region58: #{bert_encoder_forward.1} parent=39 // pred_check_branch
          %575 = sbr.rel (%p573) target = $region60
        $region59: #{bert_encoder_forward.1} parent=39 // pred_region
          %p576 = scmp.lt.s32.totalorder %s28, 1
          %s577 = scalar_select %p576, %s28, 1
          %s578 = scalar_lea.vmem %s8, %s577
        $region60: #{bert_encoder_forward.1} parent=39 // pred_fallthru
          _
        // Predicated region
        $region61: #{bert_encoder_forward.1} parent=39 // pred_check
          %p579 = pneg %p262
        $region62: #{bert_encoder_forward.1} parent=39 // pred_check_branch
          %581 = sbr.rel (%p579) target = $region64
        $region63: #{bert_encoder_forward.1} parent=39 // pred_region
          %p582 = scmp.lt.s32.totalorder %s28, 1
          %s583 = scalar_select %p582, %s28, 1
          %s584 = scalar_lea.vmem %s9, %s583
        $region64: #{bert_encoder_forward.1} parent=39 // pred_fallthru
          _
        // Predicated region
        $region65: #{bert_encoder_forward.1} parent=39 // pred_check
          %p585 = pneg %p288
        $region66: #{bert_encoder_forward.1} parent=39 // pred_check_branch
          %587 = sbr.rel (%p585) target = $region68
        $region67: #{bert_encoder_forward.1} parent=39 // pred_region
          %p588 = scmp.lt.s32.totalorder %s28, 1
          %s589 = scalar_select %p588, %s28, 1
          %s590 = smul.addr %s589, 4
          %s591 = smul.addr %s590, 8
          %s592 = scalar_lea.vmem %s10, %s591
        $region68: #{bert_encoder_forward.1} parent=39 // pred_fallthru
          _
        // Predicated region
        $region69: #{bert_encoder_forward.1} parent=39 // pred_check
          %p593 = pneg %p314
        $region70: #{bert_encoder_forward.1} parent=39 // pred_check_branch
          %595 = sbr.rel (%p593) target = $region72
        $region71: #{bert_encoder_forward.1} parent=39 // pred_region
          %p596 = scmp.lt.s32.totalorder %s28, 1
          %s597 = scalar_select %p596, %s28, 1
          %s598 = scalar_lea.vmem %s11, %s597
        $region72: #{bert_encoder_forward.1} parent=39 // pred_fallthru
          _
        // Predicated region
        $region73: #{bert_encoder_forward.1} parent=39 // pred_check
          %p599 = pneg %p340
        $region74: #{bert_encoder_forward.1} parent=39 // pred_check_branch
          %601 = sbr.rel (%p599) target = $region76
        $region75: #{bert_encoder_forward.1} parent=39 // pred_region
          %p602 = scmp.lt.s32.totalorder %s28, 1
          %s603 = scalar_select %p602, %s28, 1
          %s604 = smul.addr %s603, 8
          %s605 = smul.addr %s604, 8
          %s606 = scalar_lea.vmem %s12, %s605
        $region76: #{bert_encoder_forward.1} parent=39 // pred_fallthru
          _
        // Predicated region
        $region77: #{bert_encoder_forward.1} parent=39 // pred_check
          %p607 = pneg %p366
        $region78: #{bert_encoder_forward.1} parent=39 // pred_check_branch
          %609 = sbr.rel (%p607) target = $region80
        $region79: #{bert_encoder_forward.1} parent=39 // pred_region
          %p610 = scmp.lt.s32.totalorder %s28, 1
          %s611 = scalar_select %p610, %s28, 1
          %s612 = scalar_lea.vmem %s13, %s611
        $region80: #{bert_encoder_forward.1} parent=39 // pred_fallthru
          _
        // Predicated region
        $region81: #{bert_encoder_forward.1} parent=39 // pred_check
          %p613 = pneg %p392
        $region82: #{bert_encoder_forward.1} parent=39 // pred_check_branch
          %615 = sbr.rel (%p613) target = $region84
        $region83: #{bert_encoder_forward.1} parent=39 // pred_region
          %p616 = scmp.lt.s32.totalorder %s28, 1
          %s617 = scalar_select %p616, %s28, 1
          %s618 = scalar_lea.vmem %s14, %s617
        $region84: #{bert_encoder_forward.1} parent=39 // pred_fallthru
          _
        // Predicated region
        $region85: #{bert_encoder_forward.1} parent=39 // pred_check
          %p619 = pneg %p418
        $region86: #{bert_encoder_forward.1} parent=39 // pred_check_branch
          %621 = sbr.rel (%p619) target = $region88
        $region87: #{bert_encoder_forward.1} parent=39 // pred_region
          %p622 = scmp.lt.s32.totalorder %s28, 1
          %s623 = scalar_select %p622, %s28, 1
          %s624 = scalar_lea.vmem %s15, %s623
        $region88: #{bert_encoder_forward.1} parent=39 // pred_fallthru
          _
      $region40: #{bert_encoder_forward.1} parent=5 // pred_fallthru
        _
      %p625 = scmp.le.s32.totalorder 1, %s28
      %p626 = scmp.lt.s32.totalorder %s28, 3
      %p627 = pnand %p625, %p626
      %p628 = pneg %p627
      // Predicated region
      $region89: #{bert_encoder_forward.1} parent=5 // pred_check
        _
      $region90: #{bert_encoder_forward.1} parent=5 // pred_check_branch
        %630 = sbr.rel (%p627) target = $region92
      $region91: #{bert_encoder_forward.1} parent=5 // pred_region
        %s631 = ssub.s32 %s28, 1
        %p632 = pneg %p49
        %p633 = pneg %p46
        %p634 = pneg %p70
        %p635 = pneg %p67
        %p636 = pneg %p91
        %p637 = pneg %p88
        %p638 = pneg %p112
        %p639 = pneg %p109
        %p640 = scmp.lt.s32.totalorder %s33, 1
        %s641 = scalar_select %p640, %s33, 1
        %s642 = smul.addr %s641, 4
        %s643 = smul.addr %s642, 8
        %s644 = scalar_lea.vmem %s4, %s643
        %p645 = pneg %p138
        %p646 = pneg %p135
        %p647 = scmp.lt.s32.totalorder %s33, 1
        %s648 = scalar_select %p647, %s33, 1
        %s649 = scalar_lea.vmem %s5, %s648
        %p650 = pneg %p164
        %p651 = pneg %p161
        %p652 = scmp.lt.s32.totalorder %s33, 1
        %s653 = scalar_select %p652, %s33, 1
        %s654 = smul.addr %s653, 4
        %s655 = smul.addr %s654, 8
        %s656 = scalar_lea.vmem %s6, %s655
        %p657 = pneg %p190
        %p658 = pneg %p187
        %p659 = scmp.lt.s32.totalorder %s33, 1
        %s660 = scalar_select %p659, %s33, 1
        %s661 = scalar_lea.vmem %s7, %s660
        %p662 = pneg %p216
        %p663 = pneg %p213
        %p664 = scmp.lt.s32.totalorder %s33, 1
        %s665 = scalar_select %p664, %s33, 1
        %s666 = scalar_lea.vmem %s8, %s665
        %p667 = pneg %p242
        %p668 = pneg %p239
        %p669 = scmp.lt.s32.totalorder %s33, 1
        %s670 = scalar_select %p669, %s33, 1
        %s671 = scalar_lea.vmem %s9, %s670
        %p672 = pneg %p268
        %p673 = pneg %p265
        %p674 = scmp.lt.s32.totalorder %s33, 1
        %s675 = scalar_select %p674, %s33, 1
        %s676 = smul.addr %s675, 4
        %s677 = smul.addr %s676, 8
        %s678 = scalar_lea.vmem %s10, %s677
        %p679 = pneg %p294
        %p680 = pneg %p291
        %p681 = scmp.lt.s32.totalorder %s33, 1
        %s682 = scalar_select %p681, %s33, 1
        %s683 = scalar_lea.vmem %s11, %s682
        %p684 = pneg %p320
        %p685 = pneg %p317
        %p686 = scmp.lt.s32.totalorder %s33, 1
        %s687 = scalar_select %p686, %s33, 1
        %s688 = smul.addr %s687, 8
        %s689 = smul.addr %s688, 8
        %s690 = scalar_lea.vmem %s12, %s689
        %p691 = pneg %p346
        %p692 = pneg %p343
        %p693 = scmp.lt.s32.totalorder %s33, 1
        %s694 = scalar_select %p693, %s33, 1
        %s695 = scalar_lea.vmem %s13, %s694
        %p696 = pneg %p372
        %p697 = pneg %p369
        %p698 = scmp.lt.s32.totalorder %s33, 1
        %s699 = scalar_select %p698, %s33, 1
        %s700 = scalar_lea.vmem %s14, %s699
        %p701 = pneg %p398
        %p702 = pneg %p395
        %p703 = scmp.lt.s32.totalorder %s33, 1
        %s704 = scalar_select %p703, %s33, 1
        %s705 = scalar_lea.vmem %s15, %s704
        %p706 = pneg %p424
        %p707 = pneg %p421
        %p708 = pneg %p445
        %p709 = pneg %p442
        %p710 = pneg %p466
        %p711 = pneg %p463
        %p712 = pneg %p487
        %p713 = pneg %p484
        %p714 = pneg %p508
        %p715 = pneg %p505
        %p716 = scmp.lt.s32.totalorder %s33, 1
        %s717 = scalar_select %p716, %s33, 1
        %s718 = smul.addr %s717, 4
        %s719 = smul.addr %s718, 8
        %s720 = scalar_lea.vmem %s4, %s719
        %p721 = scmp.lt.s32.totalorder %s33, 1
        %s722 = scalar_select %p721, %s33, 1
        %s723 = scalar_lea.vmem %s5, %s722
        %p724 = scmp.lt.s32.totalorder %s33, 1
        %s725 = scalar_select %p724, %s33, 1
        %s726 = smul.addr %s725, 4
        %s727 = smul.addr %s726, 8
        %s728 = scalar_lea.vmem %s6, %s727
        %p729 = scmp.lt.s32.totalorder %s33, 1
        %s730 = scalar_select %p729, %s33, 1
        %s731 = scalar_lea.vmem %s7, %s730
        %p732 = scmp.lt.s32.totalorder %s33, 1
        %s733 = scalar_select %p732, %s33, 1
        %s734 = scalar_lea.vmem %s8, %s733
        %p735 = scmp.lt.s32.totalorder %s33, 1
        %s736 = scalar_select %p735, %s33, 1
        %s737 = scalar_lea.vmem %s9, %s736
        %p738 = scmp.lt.s32.totalorder %s33, 1
        %s739 = scalar_select %p738, %s33, 1
        %s740 = smul.addr %s739, 4
        %s741 = smul.addr %s740, 8
        %s742 = scalar_lea.vmem %s10, %s741
        %p743 = scmp.lt.s32.totalorder %s33, 1
        %s744 = scalar_select %p743, %s33, 1
        %s745 = scalar_lea.vmem %s11, %s744
        %p746 = scmp.lt.s32.totalorder %s33, 1
        %s747 = scalar_select %p746, %s33, 1
        %s748 = smul.addr %s747, 8
        %s749 = smul.addr %s748, 8
        %s750 = scalar_lea.vmem %s12, %s749
        %p751 = scmp.lt.s32.totalorder %s33, 1
        %s752 = scalar_select %p751, %s33, 1
        %s753 = scalar_lea.vmem %s13, %s752
        %p754 = scmp.lt.s32.totalorder %s33, 1
        %s755 = scalar_select %p754, %s33, 1
        %s756 = scalar_lea.vmem %s14, %s755
        %p757 = scmp.lt.s32.totalorder %s33, 1
        %s758 = scalar_select %p757, %s33, 1
        %s759 = scalar_lea.vmem %s15, %s758
        %p760 = scmp.eq.s32.totalorder %s33, 0
        // Predicated region
        $region93: #{bert_encoder_forward.1} parent=91 // pred_check
          %p761 = pneg %p760
        $region94: #{bert_encoder_forward.1} parent=91 // pred_check_branch
          %763 = sbr.rel (%p761) target = $region96
        $region95: #{bert_encoder_forward.1} parent=91 // pred_region
          %v764 = vld [vmem:[%s0] sm:$0xff]
          %v765 = vld [vmem:[%s0 + $0x8] sm:$0xff]
          %v766 = vld [vmem:[%s2] sm:$0x1]
          %v767 = vld [vmem:[%s3] sm:$0x1]
          %vm768 = vcmask 261120
          %v769 = vsel %vm768, %v764, 0.0
          %770 = vadd.xlane.f32.xlu0 %v769
          %v771 = vpop.xlane.xlu0 %770
          %v772 = vsel %vm768, %v765, 0.0
          %773 = vadd.xlane.f32.xlu0 %v772
          %v774 = vpop.xlane.xlu0 %773
          %v775 = vrcp.pop 32.0
          %v776 = vmul.f32 %v771, %v775
          %v777 = vmul.f32 %v774, %v775
          %v778 = vsub.f32 %v764, %v776
          %v779 = vsub.f32 %v765, %v777
          %v780 = vmul.f32 %v778, %v778
          %v781 = vmul.f32 %v779, %v779
          %v782 = vsel %vm768, %v780, 0.0
          %783 = vadd.xlane.f32.xlu0 %v782
          %v784 = vpop.xlane.xlu0 %783
          %v785 = vsel %vm768, %v781, 0.0
          %786 = vadd.xlane.f32.xlu0 %v785
          %v787 = vpop.xlane.xlu0 %786
          %v788 = vmul.f32 %v784, %v775
          %v789 = vmul.f32 %v787, %v775
          %v790 = vadd.f32 %v788, 1e-12
          %v791 = vadd.f32 %v789, 1e-12
          %v792 = vrsqrt.pop %v790
          %v793 = vrsqrt.pop %v791
          %v794 = vmul.f32 %v778, %v792
          %v795 = vmul.f32 %v779, %v793
          %v797 = vlaneseq
          %v798 = vshrl.u32 %v797, 7
          %v799 = vsub.s32 0, %v798
          %v800 = vrot.slane %v766, %v799
          %v802 = vmul.f32 %v794, %v800
          %v803 = vmul.f32 %v795, %v800
          %v805 = vlaneseq
          %v806 = vshrl.u32 %v805, 7
          %v807 = vsub.s32 0, %v806
          %v808 = vrot.slane %v767, %v807
          %v810 = vadd.f32 %v802, %v808
          %v811 = vadd.f32 %v803, %v808
          %812 = vst.msk [vmem:[#allocation2] sm:$0xff] %vm768, %v810
          %813 = vst.msk [vmem:[#allocation2 + $0x8] sm:$0xff] %vm768, %v811
        $region96: #{bert_encoder_forward.1} parent=91 // pred_fallthru
          _
        %v814 = vld [vmem:[#allocation2] sm:$0xff]
        %v815 = vld [vmem:[#allocation2 + $0x8] sm:$0xff]
        %v816 = vld [vmem:[%s720] sm:$0xff]
        %v817 = vld [vmem:[%s720 + $0x8] sm:$0xff]
        %v818 = vld [vmem:[%s720 + $0x10] sm:$0xff]
        %v819 = vld [vmem:[%s720 + $0x18] sm:$0xff]
        %v820 = vld [vmem:[%s723] sm:$0x1]
        %v822 = vlaneseq
        %v823 = vshrl.u32 %v822, 7
        %v824 = vsub.s32 0, %v823
        %v825 = vrot.slane %v820, %v824
        %vm827 = vcmask 261120
        %v829 = vsel %vm827, %v814, 0
        %v832 = vsel %vm827, %v815, 0
        %834 = vmatprep.subr.mxu0 0.0
        %835 = vmatpush1.msra.mxu0 %v816
        %836 = vmatprep.subr.mxu0 0.0
        %837 = vmatpush1.msra.mxu0 %v817
        %838 = vmatprep.subr.mxu0 0.0
        %839 = vmatpush1.msra.mxu0 %v818
        %840 = vmatprep.subr.mxu0 0.0
        %841 = vmatpush1.msra.mxu0 %v819
        %842 = vmatprep.subr.mxu0 0.0
        %843 = vmatpush1.msra.mxu0 0.0
        %844 = vmatprep.subr.mxu0 0.0
        %845 = vmatpush1.msra.mxu0 0.0
        %846 = vmatprep.subr.mxu0 0.0
        %847 = vmatpush1.msra.mxu0 0.0
        %848 = vmatprep.subr.mxu0 0.0
        %849 = vmatpush1.msra.mxu0 0.0
        %850 = vmatprep.subr.mxu0 0.0
        %851 = vmatpush1.msra.mxu0 0.0
        %852 = vmatprep.subr.mxu0 0.0
        %853 = vmatpush1.msra.mxu0 0.0
        %854 = vmatprep.subr.mxu0 0.0
        %855 = vmatpush1.msra.mxu0 0.0
        %856 = vmatprep.subr.mxu0 0.0
        %857 = vmatpush1.msra.mxu0 0.0
        %858 = vmatprep.subr.mxu0 0.0
        %859 = vmatpush1.msra.mxu0 0.0
        %860 = vmatprep.subr.mxu0 0.0
        %861 = vmatpush1.msra.mxu0 0.0
        %862 = vmatprep.subr.mxu0 0.0
        %863 = vmatpush1.msra.mxu0 0.0
        %864 = vmatprep.subr.mxu0 0.0
        %865 = vmatpush1.msra.mxu0 0.0
        %866 = vmatprep.subr.mxu0 0.0
        %867 = vmatpush1.msra.mxu0 0.0
        %868 = vmatprep.subr.mxu0 0.0
        %869 = vmatpush1.msra.mxu0 0.0
        %870 = vmatprep.subr.mxu0 0.0
        %871 = vmatpush1.msra.mxu0 0.0
        %872 = vmatprep.subr.mxu0 0.0
        %873 = vmatpush1.msra.mxu0 0.0
        %874 = vmatprep.subr.mxu0 0.0
        %875 = vmatpush1.msra.mxu0 0.0
        %876 = vmatprep.subr.mxu0 0.0
        %877 = vmatpush1.msra.mxu0 0.0
        %878 = vmatprep.subr.mxu0 0.0
        %879 = vmatpush1.msra.mxu0 0.0
        %880 = vmatprep.subr.mxu0 0.0
        %881 = vmatpush1.msra.mxu0 0.0
        %882 = vmatprep.subr.mxu0 0.0
        %883 = vmatpush1.msra.mxu0 0.0
        %884 = vmatprep.subr.mxu0 0.0
        %885 = vmatpush1.msra.mxu0 0.0
        %886 = vmatprep.subr.mxu0 0.0
        %887 = vmatpush1.msra.mxu0 0.0
        %888 = vmatprep.subr.mxu0 0.0
        %889 = vmatpush1.msra.mxu0 0.0
        %890 = vmatprep.subr.mxu0 0.0
        %891 = vmatpush1.msra.mxu0 0.0
        %892 = vmatprep.subr.mxu0 0.0
        %893 = vmatpush1.msra.mxu0 0.0
        %894 = vmatprep.subr.mxu0 0.0
        %895 = vmatpush1.msra.mxu0 0.0
        %896 = vmatprep.subr.mxu0 0.0
        %897 = vmatpush1.msra.mxu0 0.0
        %898 = vmatprep.mubr.f32.mxu0 0.0
        %899 = vmatmul.mubr.f32.gmra.mrb[0].mxu0 %v829
        %v900 = vpop.f32.mrb[0].mxu0
        %v901 = vadd.f32 %v825, %v900
        %v902 = vpop.f32.mrb[0].mxu0
        %903 = vmatprep.mubr.f32.mxu0 0.0
        %904 = vmatmul.mubr.f32.gmra.mrb[0].mxu0 %v832
        %v905 = vpop.f32.mrb[0].mxu0
        %v906 = vadd.f32 %v825, %v905
        %v907 = vpop.f32.mrb[0].mxu0
        %908 = vdwg.mxu0
        %v909 = vld [vmem:[%s1] sm:$0x3]
        %911 = vrot.lane.b32.xlu0 %v901, 96
        %v912 = vpop.permute.xlu0 %911
        %vm913 = vcmask 130048
        %v914 = vsel %vm913, %v901, 0
        %v916 = vsel %vm913, %v912, 0
        %918 = vmatprep.subr.mxu0 0.0
        %919 = vmatpush1.xpose.msra.mxu0 %v916
        %920 = vmatprep.subr.mxu0 0.0
        %921 = vmatpush1.xpose.msra.mxu0 0.0
        %922 = vmatprep.subr.mxu0 0.0
        %923 = vmatpush1.xpose.msra.mxu0 0.0
        %924 = vmatprep.subr.mxu0 0.0
        %925 = vmatpush1.xpose.msra.mxu0 0.0
        %926 = vmatprep.subr.mxu0 0.0
        %927 = vmatpush1.xpose.msra.mxu0 0.0
        %928 = vmatprep.subr.mxu0 0.0
        %929 = vmatpush1.xpose.msra.mxu0 0.0
        %930 = vmatprep.subr.mxu0 0.0
        %931 = vmatpush1.xpose.msra.mxu0 0.0
        %932 = vmatprep.subr.mxu0 0.0
        %933 = vmatpush1.xpose.msra.mxu0 0.0
        %934 = vmatprep.subr.mxu0 0.0
        %935 = vmatpush1.xpose.msra.mxu0 0.0
        %936 = vmatprep.subr.mxu0 0.0
        %937 = vmatpush1.xpose.msra.mxu0 0.0
        %938 = vmatprep.subr.mxu0 0.0
        %939 = vmatpush1.xpose.msra.mxu0 0.0
        %940 = vmatprep.subr.mxu0 0.0
        %941 = vmatpush1.xpose.msra.mxu0 0.0
        %942 = vmatprep.subr.mxu0 0.0
        %943 = vmatpush1.xpose.msra.mxu0 0.0
        %944 = vmatprep.subr.mxu0 0.0
        %945 = vmatpush1.xpose.msra.mxu0 0.0
        %946 = vmatprep.subr.mxu0 0.0
        %947 = vmatpush1.xpose.msra.mxu0 0.0
        %948 = vmatprep.subr.mxu0 0.0
        %949 = vmatpush1.xpose.msra.mxu0 0.0
        %950 = vmatprep.subr.mxu0 0.0
        %951 = vmatpush1.xpose.msra.mxu0 0.0
        %952 = vmatprep.subr.mxu0 0.0
        %953 = vmatpush1.xpose.msra.mxu0 0.0
        %954 = vmatprep.subr.mxu0 0.0
        %955 = vmatpush1.xpose.msra.mxu0 0.0
        %956 = vmatprep.subr.mxu0 0.0
        %957 = vmatpush1.xpose.msra.mxu0 0.0
        %958 = vmatprep.subr.mxu0 0.0
        %959 = vmatpush1.xpose.msra.mxu0 0.0
        %960 = vmatprep.subr.mxu0 0.0
        %961 = vmatpush1.xpose.msra.mxu0 0.0
        %962 = vmatprep.subr.mxu0 0.0
        %963 = vmatpush1.xpose.msra.mxu0 0.0
        %964 = vmatprep.subr.mxu0 0.0
        %965 = vmatpush1.xpose.msra.mxu0 0.0
        %966 = vmatprep.subr.mxu0 0.0
        %967 = vmatpush1.xpose.msra.mxu0 0.0
        %968 = vmatprep.subr.mxu0 0.0
        %969 = vmatpush1.xpose.msra.mxu0 0.0
        %970 = vmatprep.subr.mxu0 0.0
        %971 = vmatpush1.xpose.msra.mxu0 0.0
        %972 = vmatprep.subr.mxu0 0.0
        %973 = vmatpush1.xpose.msra.mxu0 0.0
        %974 = vmatprep.subr.mxu0 0.0
        %975 = vmatpush1.xpose.msra.mxu0 0.0
        %976 = vmatprep.subr.mxu0 0.0
        %977 = vmatpush1.xpose.msra.mxu0 0.0
        %978 = vmatprep.subr.mxu0 0.0
        %979 = vmatpush1.xpose.msra.mxu0 0.0
        %980 = vmatprep.subr.mxu0 0.0
        %981 = vmatpush1.xpose.msra.mxu0 0.0
        %982 = vmatprep.mubr.f32.mxu0 0.0
        %983 = vmatmul.mubr.f32.gmra.mrb[0].mxu0 %v914
        %v984 = vpop.f32.mrb[0].mxu0
        %v985 = vadd.f32 0.0, %v984
        %v986 = vpop.f32.mrb[0].mxu0
        %987 = vdwg.mxu0
        %v988 = vmul.f32 %v985, 0.25
        %v989 = vlaneseq
        %v990 = vshrl.u32 %v989, 7
        %v991 = vsub.s32 0, %v990
        %v992 = vrot.slane %v909, %v991
        %v993 = vadd.f32 %v988, %v992
        %vm994 = vcmask 64512
        %v995 = vsel %vm994, %v993, -inf
        %996 = vmax.xlane.f32.xlu0 %v995
        %v997 = vpop.xlane.xlu0 %996
        %v998 = vsub.f32 %v993, %v997
        %v999 = vmul.f32 %v998, 1.442695
        %v1000 = vpow.pop %v999
        %v1001 = vsel %vm994, %v1000, 0.0
        %1002 = vadd.xlane.f32.xlu0 %v1001
        %v1003 = vpop.xlane.xlu0 %1002
        %v1004 = vrcp.pop %v1003
        %v1005 = vmul.f32 %v1000, %v1004
        %1006 = vrot.lane.b32.xlu0 %v901, 64
        %v1007 = vpop.permute.xlu0 %1006
        %v1010 = vsel %vm994, %v1005, 0
        %1012 = vmatprep.subr.mxu0 0.0
        %1013 = vmatpush1.msra.mxu0 %v1007
        %1014 = vmatprep.subr.mxu0 0.0
        %1015 = vmatpush1.msra.mxu0 0.0
        %1016 = vmatprep.subr.mxu0 0.0
        %1017 = vmatpush1.msra.mxu0 0.0
        %1018 = vmatprep.subr.mxu0 0.0
        %1019 = vmatpush1.msra.mxu0 0.0
        %1020 = vmatprep.subr.mxu0 0.0
        %1021 = vmatpush1.msra.mxu0 0.0
        %1022 = vmatprep.subr.mxu0 0.0
        %1023 = vmatpush1.msra.mxu0 0.0
        %1024 = vmatprep.subr.mxu0 0.0
        %1025 = vmatpush1.msra.mxu0 0.0
        %1026 = vmatprep.subr.mxu0 0.0
        %1027 = vmatpush1.msra.mxu0 0.0
        %1028 = vmatprep.subr.mxu0 0.0
        %1029 = vmatpush1.msra.mxu0 0.0
        %1030 = vmatprep.subr.mxu0 0.0
        %1031 = vmatpush1.msra.mxu0 0.0
        %1032 = vmatprep.subr.mxu0 0.0
        %1033 = vmatpush1.msra.mxu0 0.0
        %1034 = vmatprep.subr.mxu0 0.0
        %1035 = vmatpush1.msra.mxu0 0.0
        %1036 = vmatprep.subr.mxu0 0.0
        %1037 = vmatpush1.msra.mxu0 0.0
        %1038 = vmatprep.subr.mxu0 0.0
        %1039 = vmatpush1.msra.mxu0 0.0
        %1040 = vmatprep.subr.mxu0 0.0
        %1041 = vmatpush1.msra.mxu0 0.0
        %1042 = vmatprep.subr.mxu0 0.0
        %1043 = vmatpush1.msra.mxu0 0.0
        %1044 = vmatprep.subr.mxu0 0.0
        %1045 = vmatpush1.msra.mxu0 0.0
        %1046 = vmatprep.subr.mxu0 0.0
        %1047 = vmatpush1.msra.mxu0 0.0
        %1048 = vmatprep.subr.mxu0 0.0
        %1049 = vmatpush1.msra.mxu0 0.0
        %1050 = vmatprep.subr.mxu0 0.0
        %1051 = vmatpush1.msra.mxu0 0.0
        %1052 = vmatprep.subr.mxu0 0.0
        %1053 = vmatpush1.msra.mxu0 0.0
        %1054 = vmatprep.subr.mxu0 0.0
        %1055 = vmatpush1.msra.mxu0 0.0
        %1056 = vmatprep.subr.mxu0 0.0
        %1057 = vmatpush1.msra.mxu0 0.0
        %1058 = vmatprep.subr.mxu0 0.0
        %1059 = vmatpush1.msra.mxu0 0.0
        %1060 = vmatprep.subr.mxu0 0.0
        %1061 = vmatpush1.msra.mxu0 0.0
        %1062 = vmatprep.subr.mxu0 0.0
        %1063 = vmatpush1.msra.mxu0 0.0
        %1064 = vmatprep.subr.mxu0 0.0
        %1065 = vmatpush1.msra.mxu0 0.0
        %1066 = vmatprep.subr.mxu0 0.0
        %1067 = vmatpush1.msra.mxu0 0.0
        %1068 = vmatprep.subr.mxu0 0.0
        %1069 = vmatpush1.msra.mxu0 0.0
        %1070 = vmatprep.subr.mxu0 0.0
        %1071 = vmatpush1.msra.mxu0 0.0
        %1072 = vmatprep.subr.mxu0 0.0
        %1073 = vmatpush1.msra.mxu0 0.0
        %1074 = vmatprep.subr.mxu0 0.0
        %1075 = vmatpush1.msra.mxu0 0.0
        %1076 = vmatprep.mubr.f32.mxu0 0.0
        %1077 = vmatmul.mubr.f32.gmra.mrb[0].mxu0 %v1010
        %v1078 = vpop.f32.mrb[0].mxu0
        %v1079 = vadd.f32 0.0, %v1078
        %v1080 = vpop.f32.mrb[0].mxu0
        %1081 = vdwg.mxu0
        %1082 = vrot.lane.b32.xlu0 %v901, 112
        %v1083 = vpop.permute.xlu0 %1082
        %1084 = vrot.lane.b32.xlu0 %v901, 80
        %v1085 = vpop.permute.xlu0 %1084
        %v1086 = vsel %vm913, %v1083, 0
        %v1088 = vsel %vm913, %v1085, 0
        %1090 = vmatprep.subr.mxu0 0.0
        %1091 = vmatpush1.xpose.msra.mxu0 %v1088
        %1092 = vmatprep.subr.mxu0 0.0
        %1093 = vmatpush1.xpose.msra.mxu0 0.0
        %1094 = vmatprep.subr.mxu0 0.0
        %1095 = vmatpush1.xpose.msra.mxu0 0.0
        %1096 = vmatprep.subr.mxu0 0.0
        %1097 = vmatpush1.xpose.msra.mxu0 0.0
        %1098 = vmatprep.subr.mxu0 0.0
        %1099 = vmatpush1.xpose.msra.mxu0 0.0
        %1100 = vmatprep.subr.mxu0 0.0
        %1101 = vmatpush1.xpose.msra.mxu0 0.0
        %1102 = vmatprep.subr.mxu0 0.0
        %1103 = vmatpush1.xpose.msra.mxu0 0.0
        %1104 = vmatprep.subr.mxu0 0.0
        %1105 = vmatpush1.xpose.msra.mxu0 0.0
        %1106 = vmatprep.subr.mxu0 0.0
        %1107 = vmatpush1.xpose.msra.mxu0 0.0
        %1108 = vmatprep.subr.mxu0 0.0
        %1109 = vmatpush1.xpose.msra.mxu0 0.0
        %1110 = vmatprep.subr.mxu0 0.0
        %1111 = vmatpush1.xpose.msra.mxu0 0.0
        %1112 = vmatprep.subr.mxu0 0.0
        %1113 = vmatpush1.xpose.msra.mxu0 0.0
        %1114 = vmatprep.subr.mxu0 0.0
        %1115 = vmatpush1.xpose.msra.mxu0 0.0
        %1116 = vmatprep.subr.mxu0 0.0
        %1117 = vmatpush1.xpose.msra.mxu0 0.0
        %1118 = vmatprep.subr.mxu0 0.0
        %1119 = vmatpush1.xpose.msra.mxu0 0.0
        %1120 = vmatprep.subr.mxu0 0.0
        %1121 = vmatpush1.xpose.msra.mxu0 0.0
        %1122 = vmatprep.subr.mxu0 0.0
        %1123 = vmatpush1.xpose.msra.mxu0 0.0
        %1124 = vmatprep.subr.mxu0 0.0
        %1125 = vmatpush1.xpose.msra.mxu0 0.0
        %1126 = vmatprep.subr.mxu0 0.0
        %1127 = vmatpush1.xpose.msra.mxu0 0.0
        %1128 = vmatprep.subr.mxu0 0.0
        %1129 = vmatpush1.xpose.msra.mxu0 0.0
        %1130 = vmatprep.subr.mxu0 0.0
        %1131 = vmatpush1.xpose.msra.mxu0 0.0
        %1132 = vmatprep.subr.mxu0 0.0
        %1133 = vmatpush1.xpose.msra.mxu0 0.0
        %1134 = vmatprep.subr.mxu0 0.0
        %1135 = vmatpush1.xpose.msra.mxu0 0.0
        %1136 = vmatprep.subr.mxu0 0.0
        %1137 = vmatpush1.xpose.msra.mxu0 0.0
        %1138 = vmatprep.subr.mxu0 0.0
        %1139 = vmatpush1.xpose.msra.mxu0 0.0
        %1140 = vmatprep.subr.mxu0 0.0
        %1141 = vmatpush1.xpose.msra.mxu0 0.0
        %1142 = vmatprep.subr.mxu0 0.0
        %1143 = vmatpush1.xpose.msra.mxu0 0.0
        %1144 = vmatprep.subr.mxu0 0.0
        %1145 = vmatpush1.xpose.msra.mxu0 0.0
        %1146 = vmatprep.subr.mxu0 0.0
        %1147 = vmatpush1.xpose.msra.mxu0 0.0
        %1148 = vmatprep.subr.mxu0 0.0
        %1149 = vmatpush1.xpose.msra.mxu0 0.0
        %1150 = vmatprep.subr.mxu0 0.0
        %1151 = vmatpush1.xpose.msra.mxu0 0.0
        %1152 = vmatprep.subr.mxu0 0.0
        %1153 = vmatpush1.xpose.msra.mxu0 0.0
        %1154 = vmatprep.mubr.f32.mxu0 0.0
        %1155 = vmatmul.mubr.f32.gmra.mrb[0].mxu0 %v1086
        %v1156 = vpop.f32.mrb[0].mxu0
        %v1157 = vadd.f32 0.0, %v1156
        %v1158 = vpop.f32.mrb[0].mxu0
        %1159 = vdwg.mxu0
        %v1160 = vmul.f32 %v1157, 0.25
        %v1161 = vadd.f32 %v1160, %v992
        %v1162 = vsel %vm994, %v1161, -inf
        %1163 = vmax.xlane.f32.xlu0 %v1162
        %v1164 = vpop.xlane.xlu0 %1163
        %v1165 = vsub.f32 %v1161, %v1164
        %v1166 = vmul.f32 %v1165, 1.442695
        %v1167 = vpow.pop %v1166
        %v1168 = vsel %vm994, %v1167, 0.0
        %1169 = vadd.xlane.f32.xlu0 %v1168
        %v1170 = vpop.xlane.xlu0 %1169
        %v1171 = vrcp.pop %v1170
        %v1172 = vmul.f32 %v1167, %v1171
        %1173 = vrot.lane.b32.xlu0 %v901, 48
        %v1174 = vpop.permute.xlu0 %1173
        %v1177 = vsel %vm994, %v1172, 0
        %1179 = vmatprep.subr.mxu0 0.0
        %1180 = vmatpush1.msra.mxu0 %v1174
        %1181 = vmatprep.subr.mxu0 0.0
        %1182 = vmatpush1.msra.mxu0 0.0
        %1183 = vmatprep.subr.mxu0 0.0
        %1184 = vmatpush1.msra.mxu0 0.0
        %1185 = vmatprep.subr.mxu0 0.0
        %1186 = vmatpush1.msra.mxu0 0.0
        %1187 = vmatprep.subr.mxu0 0.0
        %1188 = vmatpush1.msra.mxu0 0.0
        %1189 = vmatprep.subr.mxu0 0.0
        %1190 = vmatpush1.msra.mxu0 0.0
        %1191 = vmatprep.subr.mxu0 0.0
        %1192 = vmatpush1.msra.mxu0 0.0
        %1193 = vmatprep.subr.mxu0 0.0
        %1194 = vmatpush1.msra.mxu0 0.0
        %1195 = vmatprep.subr.mxu0 0.0
        %1196 = vmatpush1.msra.mxu0 0.0
        %1197 = vmatprep.subr.mxu0 0.0
        %1198 = vmatpush1.msra.mxu0 0.0
        %1199 = vmatprep.subr.mxu0 0.0
        %1200 = vmatpush1.msra.mxu0 0.0
        %1201 = vmatprep.subr.mxu0 0.0
        %1202 = vmatpush1.msra.mxu0 0.0
        %1203 = vmatprep.subr.mxu0 0.0
        %1204 = vmatpush1.msra.mxu0 0.0
        %1205 = vmatprep.subr.mxu0 0.0
        %1206 = vmatpush1.msra.mxu0 0.0
        %1207 = vmatprep.subr.mxu0 0.0
        %1208 = vmatpush1.msra.mxu0 0.0
        %1209 = vmatprep.subr.mxu0 0.0
        %1210 = vmatpush1.msra.mxu0 0.0
        %1211 = vmatprep.subr.mxu0 0.0
        %1212 = vmatpush1.msra.mxu0 0.0
        %1213 = vmatprep.subr.mxu0 0.0
        %1214 = vmatpush1.msra.mxu0 0.0
        %1215 = vmatprep.subr.mxu0 0.0
        %1216 = vmatpush1.msra.mxu0 0.0
        %1217 = vmatprep.subr.mxu0 0.0
        %1218 = vmatpush1.msra.mxu0 0.0
        %1219 = vmatprep.subr.mxu0 0.0
        %1220 = vmatpush1.msra.mxu0 0.0
        %1221 = vmatprep.subr.mxu0 0.0
        %1222 = vmatpush1.msra.mxu0 0.0
        %1223 = vmatprep.subr.mxu0 0.0
        %1224 = vmatpush1.msra.mxu0 0.0
        %1225 = vmatprep.subr.mxu0 0.0
        %1226 = vmatpush1.msra.mxu0 0.0
        %1227 = vmatprep.subr.mxu0 0.0
        %1228 = vmatpush1.msra.mxu0 0.0
        %1229 = vmatprep.subr.mxu0 0.0
        %1230 = vmatpush1.msra.mxu0 0.0
        %1231 = vmatprep.subr.mxu0 0.0
        %1232 = vmatpush1.msra.mxu0 0.0
        %1233 = vmatprep.subr.mxu0 0.0
        %1234 = vmatpush1.msra.mxu0 0.0
        %1235 = vmatprep.subr.mxu0 0.0
        %1236 = vmatpush1.msra.mxu0 0.0
        %1237 = vmatprep.subr.mxu0 0.0
        %1238 = vmatpush1.msra.mxu0 0.0
        %1239 = vmatprep.subr.mxu0 0.0
        %1240 = vmatpush1.msra.mxu0 0.0
        %1241 = vmatprep.subr.mxu0 0.0
        %1242 = vmatpush1.msra.mxu0 0.0
        %1243 = vmatprep.mubr.f32.mxu0 0.0
        %1244 = vmatmul.mubr.f32.gmra.mrb[0].mxu0 %v1177
        %v1245 = vpop.f32.mrb[0].mxu0
        %v1246 = vadd.f32 0.0, %v1245
        %v1247 = vpop.f32.mrb[0].mxu0
        %1248 = vdwg.mxu0
        %1250 = vrot.lane.b32.xlu0 %v1246, 16
        %v1251 = vpop.permute.xlu0 %1250
        %v1253 = vsel %vm913, %v1079, %v1251
        %1255 = vrot.lane.b32.xlu0 %v906, 96
        %v1256 = vpop.permute.xlu0 %1255
        %v1257 = vsel %vm913, %v906, 0
        %v1259 = vsel %vm913, %v1256, 0
        %1261 = vmatprep.subr.mxu0 0.0
        %1262 = vmatpush1.xpose.msra.mxu0 %v1259
        %1263 = vmatprep.subr.mxu0 0.0
        %1264 = vmatpush1.xpose.msra.mxu0 0.0
        %1265 = vmatprep.subr.mxu0 0.0
        %1266 = vmatpush1.xpose.msra.mxu0 0.0
        %1267 = vmatprep.subr.mxu0 0.0
        %1268 = vmatpush1.xpose.msra.mxu0 0.0
        %1269 = vmatprep.subr.mxu0 0.0
        %1270 = vmatpush1.xpose.msra.mxu0 0.0
        %1271 = vmatprep.subr.mxu0 0.0
        %1272 = vmatpush1.xpose.msra.mxu0 0.0
        %1273 = vmatprep.subr.mxu0 0.0
        %1274 = vmatpush1.xpose.msra.mxu0 0.0
        %1275 = vmatprep.subr.mxu0 0.0
        %1276 = vmatpush1.xpose.msra.mxu0 0.0
        %1277 = vmatprep.subr.mxu0 0.0
        %1278 = vmatpush1.xpose.msra.mxu0 0.0
        %1279 = vmatprep.subr.mxu0 0.0
        %1280 = vmatpush1.xpose.msra.mxu0 0.0
        %1281 = vmatprep.subr.mxu0 0.0
        %1282 = vmatpush1.xpose.msra.mxu0 0.0
        %1283 = vmatprep.subr.mxu0 0.0
        %1284 = vmatpush1.xpose.msra.mxu0 0.0
        %1285 = vmatprep.subr.mxu0 0.0
        %1286 = vmatpush1.xpose.msra.mxu0 0.0
        %1287 = vmatprep.subr.mxu0 0.0
        %1288 = vmatpush1.xpose.msra.mxu0 0.0
        %1289 = vmatprep.subr.mxu0 0.0
        %1290 = vmatpush1.xpose.msra.mxu0 0.0
        %1291 = vmatprep.subr.mxu0 0.0
        %1292 = vmatpush1.xpose.msra.mxu0 0.0
        %1293 = vmatprep.subr.mxu0 0.0
        %1294 = vmatpush1.xpose.msra.mxu0 0.0
        %1295 = vmatprep.subr.mxu0 0.0
        %1296 = vmatpush1.xpose.msra.mxu0 0.0
        %1297 = vmatprep.subr.mxu0 0.0
        %1298 = vmatpush1.xpose.msra.mxu0 0.0
        %1299 = vmatprep.subr.mxu0 0.0
        %1300 = vmatpush1.xpose.msra.mxu0 0.0
        %1301 = vmatprep.subr.mxu0 0.0
        %1302 = vmatpush1.xpose.msra.mxu0 0.0
        %1303 = vmatprep.subr.mxu0 0.0
        %1304 = vmatpush1.xpose.msra.mxu0 0.0
        %1305 = vmatprep.subr.mxu0 0.0
        %1306 = vmatpush1.xpose.msra.mxu0 0.0
        %1307 = vmatprep.subr.mxu0 0.0
        %1308 = vmatpush1.xpose.msra.mxu0 0.0
        %1309 = vmatprep.subr.mxu0 0.0
        %1310 = vmatpush1.xpose.msra.mxu0 0.0
        %1311 = vmatprep.subr.mxu0 0.0
        %1312 = vmatpush1.xpose.msra.mxu0 0.0
        %1313 = vmatprep.subr.mxu0 0.0
        %1314 = vmatpush1.xpose.msra.mxu0 0.0
        %1315 = vmatprep.subr.mxu0 0.0
        %1316 = vmatpush1.xpose.msra.mxu0 0.0
        %1317 = vmatprep.subr.mxu0 0.0
        %1318 = vmatpush1.xpose.msra.mxu0 0.0
        %1319 = vmatprep.subr.mxu0 0.0
        %1320 = vmatpush1.xpose.msra.mxu0 0.0
        %1321 = vmatprep.subr.mxu0 0.0
        %1322 = vmatpush1.xpose.msra.mxu0 0.0
        %1323 = vmatprep.subr.mxu0 0.0
        %1324 = vmatpush1.xpose.msra.mxu0 0.0
        %1325 = vmatprep.mubr.f32.mxu0 0.0
        %1326 = vmatmul.mubr.f32.gmra.mrb[0].mxu0 %v1257
        %v1327 = vpop.f32.mrb[0].mxu0
        %v1328 = vadd.f32 0.0, %v1327
        %v1329 = vpop.f32.mrb[0].mxu0
        %1330 = vdwg.mxu0
        %v1331 = vmul.f32 %v1328, 0.25
        %v1332 = vlaneseq
        %v1333 = vshrl.u32 %v1332, 7
        %v1334 = vsub.s32 1, %v1333
        %v1335 = vrot.slane %v909, %v1334
        %v1336 = vadd.f32 %v1331, %v1335
        %v1337 = vsel %vm994, %v1336, -inf
        %1338 = vmax.xlane.f32.xlu0 %v1337
        %v1339 = vpop.xlane.xlu0 %1338
        %v1340 = vsub.f32 %v1336, %v1339
        %v1341 = vmul.f32 %v1340, 1.442695
        %v1342 = vpow.pop %v1341
        %v1343 = vsel %vm994, %v1342, 0.0
        %1344 = vadd.xlane.f32.xlu0 %v1343
        %v1345 = vpop.xlane.xlu0 %1344
        %v1346 = vrcp.pop %v1345
        %v1347 = vmul.f32 %v1342, %v1346
        %1348 = vrot.lane.b32.xlu0 %v906, 64
        %v1349 = vpop.permute.xlu0 %1348
        %v1352 = vsel %vm994, %v1347, 0
        %1354 = vmatprep.subr.mxu0 0.0
        %1355 = vmatpush1.msra.mxu0 %v1349
        %1356 = vmatprep.subr.mxu0 0.0
        %1357 = vmatpush1.msra.mxu0 0.0
        %1358 = vmatprep.subr.mxu0 0.0
        %1359 = vmatpush1.msra.mxu0 0.0
        %1360 = vmatprep.subr.mxu0 0.0
        %1361 = vmatpush1.msra.mxu0 0.0
        %1362 = vmatprep.subr.mxu0 0.0
        %1363 = vmatpush1.msra.mxu0 0.0
        %1364 = vmatprep.subr.mxu0 0.0
        %1365 = vmatpush1.msra.mxu0 0.0
        %1366 = vmatprep.subr.mxu0 0.0
        %1367 = vmatpush1.msra.mxu0 0.0
        %1368 = vmatprep.subr.mxu0 0.0
        %1369 = vmatpush1.msra.mxu0 0.0
        %1370 = vmatprep.subr.mxu0 0.0
        %1371 = vmatpush1.msra.mxu0 0.0
        %1372 = vmatprep.subr.mxu0 0.0
        %1373 = vmatpush1.msra.mxu0 0.0
        %1374 = vmatprep.subr.mxu0 0.0
        %1375 = vmatpush1.msra.mxu0 0.0
        %1376 = vmatprep.subr.mxu0 0.0
        %1377 = vmatpush1.msra.mxu0 0.0
        %1378 = vmatprep.subr.mxu0 0.0
        %1379 = vmatpush1.msra.mxu0 0.0
        %1380 = vmatprep.subr.mxu0 0.0
        %1381 = vmatpush1.msra.mxu0 0.0
        %1382 = vmatprep.subr.mxu0 0.0
        %1383 = vmatpush1.msra.mxu0 0.0
        %1384 = vmatprep.subr.mxu0 0.0
        %1385 = vmatpush1.msra.mxu0 0.0
        %1386 = vmatprep.subr.mxu0 0.0
        %1387 = vmatpush1.msra.mxu0 0.0
        %1388 = vmatprep.subr.mxu0 0.0
        %1389 = vmatpush1.msra.mxu0 0.0
        %1390 = vmatprep.subr.mxu0 0.0
        %1391 = vmatpush1.msra.mxu0 0.0
        %1392 = vmatprep.subr.mxu0 0.0
        %1393 = vmatpush1.msra.mxu0 0.0
        %1394 = vmatprep.subr.mxu0 0.0
        %1395 = vmatpush1.msra.mxu0 0.0
        %1396 = vmatprep.subr.mxu0 0.0
        %1397 = vmatpush1.msra.mxu0 0.0
        %1398 = vmatprep.subr.mxu0 0.0
        %1399 = vmatpush1.msra.mxu0 0.0
        %1400 = vmatprep.subr.mxu0 0.0
        %1401 = vmatpush1.msra.mxu0 0.0
        %1402 = vmatprep.subr.mxu0 0.0
        %1403 = vmatpush1.msra.mxu0 0.0
        %1404 = vmatprep.subr.mxu0 0.0
        %1405 = vmatpush1.msra.mxu0 0.0
        %1406 = vmatprep.subr.mxu0 0.0
        %1407 = vmatpush1.msra.mxu0 0.0
        %1408 = vmatprep.subr.mxu0 0.0
        %1409 = vmatpush1.msra.mxu0 0.0
        %1410 = vmatprep.subr.mxu0 0.0
        %1411 = vmatpush1.msra.mxu0 0.0
        %1412 = vmatprep.subr.mxu0 0.0
        %1413 = vmatpush1.msra.mxu0 0.0
        %1414 = vmatprep.subr.mxu0 0.0
        %1415 = vmatpush1.msra.mxu0 0.0
        %1416 = vmatprep.subr.mxu0 0.0
        %1417 = vmatpush1.msra.mxu0 0.0
        %1418 = vmatprep.mubr.f32.mxu0 0.0
        %1419 = vmatmul.mubr.f32.gmra.mrb[0].mxu0 %v1352
        %v1420 = vpop.f32.mrb[0].mxu0
        %v1421 = vadd.f32 0.0, %v1420
        %v1422 = vpop.f32.mrb[0].mxu0
        %1423 = vdwg.mxu0
        %1424 = vrot.lane.b32.xlu0 %v906, 112
        %v1425 = vpop.permute.xlu0 %1424
        %1426 = vrot.lane.b32.xlu0 %v906, 80
        %v1427 = vpop.permute.xlu0 %1426
        %v1428 = vsel %vm913, %v1425, 0
        %v1430 = vsel %vm913, %v1427, 0
        %1432 = vmatprep.subr.mxu0 0.0
        %1433 = vmatpush1.xpose.msra.mxu0 %v1430
        %1434 = vmatprep.subr.mxu0 0.0
        %1435 = vmatpush1.xpose.msra.mxu0 0.0
        %1436 = vmatprep.subr.mxu0 0.0
        %1437 = vmatpush1.xpose.msra.mxu0 0.0
        %1438 = vmatprep.subr.mxu0 0.0
        %1439 = vmatpush1.xpose.msra.mxu0 0.0
        %1440 = vmatprep.subr.mxu0 0.0
        %1441 = vmatpush1.xpose.msra.mxu0 0.0
        %1442 = vmatprep.subr.mxu0 0.0
        %1443 = vmatpush1.xpose.msra.mxu0 0.0
        %1444 = vmatprep.subr.mxu0 0.0
        %1445 = vmatpush1.xpose.msra.mxu0 0.0
        %1446 = vmatprep.subr.mxu0 0.0
        %1447 = vmatpush1.xpose.msra.mxu0 0.0
        %1448 = vmatprep.subr.mxu0 0.0
        %1449 = vmatpush1.xpose.msra.mxu0 0.0
        %1450 = vmatprep.subr.mxu0 0.0
        %1451 = vmatpush1.xpose.msra.mxu0 0.0
        %1452 = vmatprep.subr.mxu0 0.0
        %1453 = vmatpush1.xpose.msra.mxu0 0.0
        %1454 = vmatprep.subr.mxu0 0.0
        %1455 = vmatpush1.xpose.msra.mxu0 0.0
        %1456 = vmatprep.subr.mxu0 0.0
        %1457 = vmatpush1.xpose.msra.mxu0 0.0
        %1458 = vmatprep.subr.mxu0 0.0
        %1459 = vmatpush1.xpose.msra.mxu0 0.0
        %1460 = vmatprep.subr.mxu0 0.0
        %1461 = vmatpush1.xpose.msra.mxu0 0.0
        %1462 = vmatprep.subr.mxu0 0.0
        %1463 = vmatpush1.xpose.msra.mxu0 0.0
        %1464 = vmatprep.subr.mxu0 0.0
        %1465 = vmatpush1.xpose.msra.mxu0 0.0
        %1466 = vmatprep.subr.mxu0 0.0
        %1467 = vmatpush1.xpose.msra.mxu0 0.0
        %1468 = vmatprep.subr.mxu0 0.0
        %1469 = vmatpush1.xpose.msra.mxu0 0.0
        %1470 = vmatprep.subr.mxu0 0.0
        %1471 = vmatpush1.xpose.msra.mxu0 0.0
        %1472 = vmatprep.subr.mxu0 0.0
        %1473 = vmatpush1.xpose.msra.mxu0 0.0
        %1474 = vmatprep.subr.mxu0 0.0
        %1475 = vmatpush1.xpose.msra.mxu0 0.0
        %1476 = vmatprep.subr.mxu0 0.0
        %1477 = vmatpush1.xpose.msra.mxu0 0.0
        %1478 = vmatprep.subr.mxu0 0.0
        %1479 = vmatpush1.xpose.msra.mxu0 0.0
        %1480 = vmatprep.subr.mxu0 0.0
        %1481 = vmatpush1.xpose.msra.mxu0 0.0
        %1482 = vmatprep.subr.mxu0 0.0
        %1483 = vmatpush1.xpose.msra.mxu0 0.0
        %1484 = vmatprep.subr.mxu0 0.0
        %1485 = vmatpush1.xpose.msra.mxu0 0.0
        %1486 = vmatprep.subr.mxu0 0.0
        %1487 = vmatpush1.xpose.msra.mxu0 0.0
        %1488 = vmatprep.subr.mxu0 0.0
        %1489 = vmatpush1.xpose.msra.mxu0 0.0
        %1490 = vmatprep.subr.mxu0 0.0
        %1491 = vmatpush1.xpose.msra.mxu0 0.0
        %1492 = vmatprep.subr.mxu0 0.0
        %1493 = vmatpush1.xpose.msra.mxu0 0.0
        %1494 = vmatprep.subr.mxu0 0.0
        %1495 = vmatpush1.xpose.msra.mxu0 0.0
        %1496 = vmatprep.mubr.f32.mxu0 0.0
        %1497 = vmatmul.mubr.f32.gmra.mrb[0].mxu0 %v1428
        %v1498 = vpop.f32.mrb[0].mxu0
        %v1499 = vadd.f32 0.0, %v1498
        %v1500 = vpop.f32.mrb[0].mxu0
        %1501 = vdwg.mxu0
        %v1502 = vmul.f32 %v1499, 0.25
        %v1503 = vadd.f32 %v1502, %v1335
        %v1504 = vsel %vm994, %v1503, -inf
        %1505 = vmax.xlane.f32.xlu0 %v1504
        %v1506 = vpop.xlane.xlu0 %1505
        %v1507 = vsub.f32 %v1503, %v1506
        %v1508 = vmul.f32 %v1507, 1.442695
        %v1509 = vpow.pop %v1508
        %v1510 = vsel %vm994, %v1509, 0.0
        %1511 = vadd.xlane.f32.xlu0 %v1510
        %v1512 = vpop.xlane.xlu0 %1511
        %v1513 = vrcp.pop %v1512
        %v1514 = vmul.f32 %v1509, %v1513
        %1515 = vrot.lane.b32.xlu0 %v906, 48
        %v1516 = vpop.permute.xlu0 %1515
        %v1519 = vsel %vm994, %v1514, 0
        %1521 = vmatprep.subr.mxu0 0.0
        %1522 = vmatpush1.msra.mxu0 %v1516
        %1523 = vmatprep.subr.mxu0 0.0
        %1524 = vmatpush1.msra.mxu0 0.0
        %1525 = vmatprep.subr.mxu0 0.0
        %1526 = vmatpush1.msra.mxu0 0.0
        %1527 = vmatprep.subr.mxu0 0.0
        %1528 = vmatpush1.msra.mxu0 0.0
        %1529 = vmatprep.subr.mxu0 0.0
        %1530 = vmatpush1.msra.mxu0 0.0
        %1531 = vmatprep.subr.mxu0 0.0
        %1532 = vmatpush1.msra.mxu0 0.0
        %1533 = vmatprep.subr.mxu0 0.0
        %1534 = vmatpush1.msra.mxu0 0.0
        %1535 = vmatprep.subr.mxu0 0.0
        %1536 = vmatpush1.msra.mxu0 0.0
        %1537 = vmatprep.subr.mxu0 0.0
        %1538 = vmatpush1.msra.mxu0 0.0
        %1539 = vmatprep.subr.mxu0 0.0
        %1540 = vmatpush1.msra.mxu0 0.0
        %1541 = vmatprep.subr.mxu0 0.0
        %1542 = vmatpush1.msra.mxu0 0.0
        %1543 = vmatprep.subr.mxu0 0.0
        %1544 = vmatpush1.msra.mxu0 0.0
        %1545 = vmatprep.subr.mxu0 0.0
        %1546 = vmatpush1.msra.mxu0 0.0
        %1547 = vmatprep.subr.mxu0 0.0
        %1548 = vmatpush1.msra.mxu0 0.0
        %1549 = vmatprep.subr.mxu0 0.0
        %1550 = vmatpush1.msra.mxu0 0.0
        %1551 = vmatprep.subr.mxu0 0.0
        %1552 = vmatpush1.msra.mxu0 0.0
        %1553 = vmatprep.subr.mxu0 0.0
        %1554 = vmatpush1.msra.mxu0 0.0
        %1555 = vmatprep.subr.mxu0 0.0
        %1556 = vmatpush1.msra.mxu0 0.0
        %1557 = vmatprep.subr.mxu0 0.0
        %1558 = vmatpush1.msra.mxu0 0.0
        %1559 = vmatprep.subr.mxu0 0.0
        %1560 = vmatpush1.msra.mxu0 0.0
        %1561 = vmatprep.subr.mxu0 0.0
        %1562 = vmatpush1.msra.mxu0 0.0
        %1563 = vmatprep.subr.mxu0 0.0
        %1564 = vmatpush1.msra.mxu0 0.0
        %1565 = vmatprep.subr.mxu0 0.0
        %1566 = vmatpush1.msra.mxu0 0.0
        %1567 = vmatprep.subr.mxu0 0.0
        %1568 = vmatpush1.msra.mxu0 0.0
        %1569 = vmatprep.subr.mxu0 0.0
        %1570 = vmatpush1.msra.mxu0 0.0
        %1571 = vmatprep.subr.mxu0 0.0
        %1572 = vmatpush1.msra.mxu0 0.0
        %1573 = vmatprep.subr.mxu0 0.0
        %1574 = vmatpush1.msra.mxu0 0.0
        %1575 = vmatprep.subr.mxu0 0.0
        %1576 = vmatpush1.msra.mxu0 0.0
        %1577 = vmatprep.subr.mxu0 0.0
        %1578 = vmatpush1.msra.mxu0 0.0
        %1579 = vmatprep.subr.mxu0 0.0
        %1580 = vmatpush1.msra.mxu0 0.0
        %1581 = vmatprep.subr.mxu0 0.0
        %1582 = vmatpush1.msra.mxu0 0.0
        %1583 = vmatprep.subr.mxu0 0.0
        %1584 = vmatpush1.msra.mxu0 0.0
        %1585 = vmatprep.mubr.f32.mxu0 0.0
        %1586 = vmatmul.mubr.f32.gmra.mrb[0].mxu0 %v1519
        %v1587 = vpop.f32.mrb[0].mxu0
        %v1588 = vadd.f32 0.0, %v1587
        %v1589 = vpop.f32.mrb[0].mxu0
        %1590 = vdwg.mxu0
        %1592 = vrot.lane.b32.xlu0 %v1588, 16
        %v1593 = vpop.permute.xlu0 %1592
        %v1595 = vsel %vm913, %v1421, %v1593
        %v1596 = vld [vmem:[%s728] sm:$0xff]
        %v1597 = vld [vmem:[%s728 + $0x8] sm:$0xff]
        %v1598 = vld [vmem:[%s728 + $0x10] sm:$0xff]
        %v1599 = vld [vmem:[%s728 + $0x18] sm:$0xff]
        %v1600 = vld [vmem:[%s731] sm:$0x1]
        %v1602 = vlaneseq
        %v1603 = vshrl.u32 %v1602, 7
        %v1604 = vsub.s32 0, %v1603
        %v1605 = vrot.slane %v1600, %v1604
        %v1608 = vsel %vm827, %v1253, 0
        %v1611 = vsel %vm827, %v1595, 0
        %1613 = vmatprep.subr.mxu0 0.0
        %1614 = vmatpush1.msra.mxu0 %v1596
        %1615 = vmatprep.subr.mxu0 0.0
        %1616 = vmatpush1.msra.mxu0 %v1597
        %1617 = vmatprep.subr.mxu0 0.0
        %1618 = vmatpush1.msra.mxu0 %v1598
        %1619 = vmatprep.subr.mxu0 0.0
        %1620 = vmatpush1.msra.mxu0 %v1599
        %1621 = vmatprep.subr.mxu0 0.0
        %1622 = vmatpush1.msra.mxu0 0.0
        %1623 = vmatprep.subr.mxu0 0.0
        %1624 = vmatpush1.msra.mxu0 0.0
        %1625 = vmatprep.subr.mxu0 0.0
        %1626 = vmatpush1.msra.mxu0 0.0
        %1627 = vmatprep.subr.mxu0 0.0
        %1628 = vmatpush1.msra.mxu0 0.0
        %1629 = vmatprep.subr.mxu0 0.0
        %1630 = vmatpush1.msra.mxu0 0.0
        %1631 = vmatprep.subr.mxu0 0.0
        %1632 = vmatpush1.msra.mxu0 0.0
        %1633 = vmatprep.subr.mxu0 0.0
        %1634 = vmatpush1.msra.mxu0 0.0
        %1635 = vmatprep.subr.mxu0 0.0
        %1636 = vmatpush1.msra.mxu0 0.0
        %1637 = vmatprep.subr.mxu0 0.0
        %1638 = vmatpush1.msra.mxu0 0.0
        %1639 = vmatprep.subr.mxu0 0.0
        %1640 = vmatpush1.msra.mxu0 0.0
        %1641 = vmatprep.subr.mxu0 0.0
        %1642 = vmatpush1.msra.mxu0 0.0
        %1643 = vmatprep.subr.mxu0 0.0
        %1644 = vmatpush1.msra.mxu0 0.0
        %1645 = vmatprep.subr.mxu0 0.0
        %1646 = vmatpush1.msra.mxu0 0.0
        %1647 = vmatprep.subr.mxu0 0.0
        %1648 = vmatpush1.msra.mxu0 0.0
        %1649 = vmatprep.subr.mxu0 0.0
        %1650 = vmatpush1.msra.mxu0 0.0
        %1651 = vmatprep.subr.mxu0 0.0
        %1652 = vmatpush1.msra.mxu0 0.0
        %1653 = vmatprep.subr.mxu0 0.0
        %1654 = vmatpush1.msra.mxu0 0.0
        %1655 = vmatprep.subr.mxu0 0.0
        %1656 = vmatpush1.msra.mxu0 0.0
        %1657 = vmatprep.subr.mxu0 0.0
        %1658 = vmatpush1.msra.mxu0 0.0
        %1659 = vmatprep.subr.mxu0 0.0
        %1660 = vmatpush1.msra.mxu0 0.0
        %1661 = vmatprep.subr.mxu0 0.0
        %1662 = vmatpush1.msra.mxu0 0.0
        %1663 = vmatprep.subr.mxu0 0.0
        %1664 = vmatpush1.msra.mxu0 0.0
        %1665 = vmatprep.subr.mxu0 0.0
        %1666 = vmatpush1.msra.mxu0 0.0
        %1667 = vmatprep.subr.mxu0 0.0
        %1668 = vmatpush1.msra.mxu0 0.0
        %1669 = vmatprep.subr.mxu0 0.0
        %1670 = vmatpush1.msra.mxu0 0.0
        %1671 = vmatprep.subr.mxu0 0.0
        %1672 = vmatpush1.msra.mxu0 0.0
        %1673 = vmatprep.subr.mxu0 0.0
        %1674 = vmatpush1.msra.mxu0 0.0
        %1675 = vmatprep.subr.mxu0 0.0
        %1676 = vmatpush1.msra.mxu0 0.0
        %1677 = vmatprep.mubr.f32.mxu0 0.0
        %1678 = vmatmul.mubr.f32.gmra.mrb[0].mxu0 %v1608
        %v1679 = vpop.f32.mrb[0].mxu0
        %v1680 = vadd.f32 %v1605, %v1679
        %v1681 = vpop.f32.mrb[0].mxu0
        %1682 = vmatprep.mubr.f32.mxu0 0.0
        %1683 = vmatmul.mubr.f32.gmra.mrb[0].mxu0 %v1611
        %v1684 = vpop.f32.mrb[0].mxu0
        %v1685 = vadd.f32 %v1605, %v1684
        %v1686 = vpop.f32.mrb[0].mxu0
        %1687 = vdwg.mxu0
        %v1688 = vadd.f32 %v1680, %v814
        %v1689 = vadd.f32 %v1685, %v815
        %v1690 = vld [vmem:[%s734] sm:$0x1]
        %v1691 = vld [vmem:[%s737] sm:$0x1]
        %v1692 = vsel %vm827, %v1688, 0.0
        %1693 = vadd.xlane.f32.xlu0 %v1692
        %v1694 = vpop.xlane.xlu0 %1693
        %v1695 = vsel %vm827, %v1689, 0.0
        %1696 = vadd.xlane.f32.xlu0 %v1695
        %v1697 = vpop.xlane.xlu0 %1696
        %v1698 = vrcp.pop 32.0
        %v1699 = vmul.f32 %v1694, %v1698
        %v1700 = vmul.f32 %v1697, %v1698
        %v1701 = vsub.f32 %v1688, %v1699
        %v1702 = vsub.f32 %v1689, %v1700
        %v1703 = vmul.f32 %v1701, %v1701
        %v1704 = vmul.f32 %v1702, %v1702
        %v1705 = vsel %vm827, %v1703, 0.0
        %1706 = vadd.xlane.f32.xlu0 %v1705
        %v1707 = vpop.xlane.xlu0 %1706
        %v1708 = vsel %vm827, %v1704, 0.0
        %1709 = vadd.xlane.f32.xlu0 %v1708
        %v1710 = vpop.xlane.xlu0 %1709
        %v1711 = vmul.f32 %v1707, %v1698
        %v1712 = vmul.f32 %v1710, %v1698
        %v1713 = vadd.f32 %v1711, 1e-12
        %v1714 = vadd.f32 %v1712, 1e-12
        %v1715 = vrsqrt.pop %v1713
        %v1716 = vrsqrt.pop %v1714
        %v1717 = vmul.f32 %v1701, %v1715
        %v1718 = vmul.f32 %v1702, %v1716
        %v1720 = vlaneseq
        %v1721 = vshrl.u32 %v1720, 7
        %v1722 = vsub.s32 0, %v1721
        %v1723 = vrot.slane %v1690, %v1722
        %v1725 = vmul.f32 %v1717, %v1723
        %v1726 = vmul.f32 %v1718, %v1723
        %v1728 = vlaneseq
        %v1729 = vshrl.u32 %v1728, 7
        %v1730 = vsub.s32 0, %v1729
        %v1731 = vrot.slane %v1691, %v1730
        %v1733 = vadd.f32 %v1725, %v1731
        %v1734 = vadd.f32 %v1726, %v1731
        %v1735 = vld [vmem:[%s742] sm:$0xff]
        %v1736 = vld [vmem:[%s742 + $0x8] sm:$0xff]
        %v1737 = vld [vmem:[%s742 + $0x10] sm:$0xff]
        %v1738 = vld [vmem:[%s742 + $0x18] sm:$0xff]
        %v1739 = vld [vmem:[%s745] sm:$0x1]
        %v1741 = vlaneseq
        %v1742 = vshrl.u32 %v1741, 7
        %v1743 = vsub.s32 0, %v1742
        %v1744 = vrot.slane %v1739, %v1743
        %v1747 = vsel %vm827, %v1733, 0
        %v1750 = vsel %vm827, %v1734, 0
        %1752 = vmatprep.subr.mxu0 0.0
        %1753 = vmatpush1.msra.mxu0 %v1735
        %1754 = vmatprep.subr.mxu0 0.0
        %1755 = vmatpush1.msra.mxu0 %v1736
        %1756 = vmatprep.subr.mxu0 0.0
        %1757 = vmatpush1.msra.mxu0 %v1737
        %1758 = vmatprep.subr.mxu0 0.0
        %1759 = vmatpush1.msra.mxu0 %v1738
        %1760 = vmatprep.subr.mxu0 0.0
        %1761 = vmatpush1.msra.mxu0 0.0
        %1762 = vmatprep.subr.mxu0 0.0
        %1763 = vmatpush1.msra.mxu0 0.0
        %1764 = vmatprep.subr.mxu0 0.0
        %1765 = vmatpush1.msra.mxu0 0.0
        %1766 = vmatprep.subr.mxu0 0.0
        %1767 = vmatpush1.msra.mxu0 0.0
        %1768 = vmatprep.subr.mxu0 0.0
        %1769 = vmatpush1.msra.mxu0 0.0
        %1770 = vmatprep.subr.mxu0 0.0
        %1771 = vmatpush1.msra.mxu0 0.0
        %1772 = vmatprep.subr.mxu0 0.0
        %1773 = vmatpush1.msra.mxu0 0.0
        %1774 = vmatprep.subr.mxu0 0.0
        %1775 = vmatpush1.msra.mxu0 0.0
        %1776 = vmatprep.subr.mxu0 0.0
        %1777 = vmatpush1.msra.mxu0 0.0
        %1778 = vmatprep.subr.mxu0 0.0
        %1779 = vmatpush1.msra.mxu0 0.0
        %1780 = vmatprep.subr.mxu0 0.0
        %1781 = vmatpush1.msra.mxu0 0.0
        %1782 = vmatprep.subr.mxu0 0.0
        %1783 = vmatpush1.msra.mxu0 0.0
        %1784 = vmatprep.subr.mxu0 0.0
        %1785 = vmatpush1.msra.mxu0 0.0
        %1786 = vmatprep.subr.mxu0 0.0
        %1787 = vmatpush1.msra.mxu0 0.0
        %1788 = vmatprep.subr.mxu0 0.0
        %1789 = vmatpush1.msra.mxu0 0.0
        %1790 = vmatprep.subr.mxu0 0.0
        %1791 = vmatpush1.msra.mxu0 0.0
        %1792 = vmatprep.subr.mxu0 0.0
        %1793 = vmatpush1.msra.mxu0 0.0
        %1794 = vmatprep.subr.mxu0 0.0
        %1795 = vmatpush1.msra.mxu0 0.0
        %1796 = vmatprep.subr.mxu0 0.0
        %1797 = vmatpush1.msra.mxu0 0.0
        %1798 = vmatprep.subr.mxu0 0.0
        %1799 = vmatpush1.msra.mxu0 0.0
        %1800 = vmatprep.subr.mxu0 0.0
        %1801 = vmatpush1.msra.mxu0 0.0
        %1802 = vmatprep.subr.mxu0 0.0
        %1803 = vmatpush1.msra.mxu0 0.0
        %1804 = vmatprep.subr.mxu0 0.0
        %1805 = vmatpush1.msra.mxu0 0.0
        %1806 = vmatprep.subr.mxu0 0.0
        %1807 = vmatpush1.msra.mxu0 0.0
        %1808 = vmatprep.subr.mxu0 0.0
        %1809 = vmatpush1.msra.mxu0 0.0
        %1810 = vmatprep.subr.mxu0 0.0
        %1811 = vmatpush1.msra.mxu0 0.0
        %1812 = vmatprep.subr.mxu0 0.0
        %1813 = vmatpush1.msra.mxu0 0.0
        %1814 = vmatprep.subr.mxu0 0.0
        %1815 = vmatpush1.msra.mxu0 0.0
        %1816 = vmatprep.mubr.f32.mxu0 0.0
        %1817 = vmatmul.mubr.f32.gmra.mrb[0].mxu0 %v1747
        %v1818 = vpop.f32.mrb[0].mxu0
        %v1819 = vadd.f32 %v1744, %v1818
        %v1820 = vpop.f32.mrb[0].mxu0
        %1821 = vmatprep.mubr.f32.mxu0 0.0
        %1822 = vmatmul.mubr.f32.gmra.mrb[0].mxu0 %v1750
        %v1823 = vpop.f32.mrb[0].mxu0
        %v1824 = vadd.f32 %v1744, %v1823
        %v1825 = vpop.f32.mrb[0].mxu0
        %1826 = vdwg.mxu0
        %v1827 = vmul.f32 %v1819, 0.5
        %v1828 = vmul.f32 %v1824, 0.5
        %v1829 = vmul.f32 %v1819, 0.70710677
        %v1830 = vmul.f32 %v1824, 0.70710677
        %v1831 = verf.f32.pop %v1829
        %v1832 = verf.f32.pop %v1830
        %v1833 = vadd.f32 %v1831, 1.0
        %v1834 = vadd.f32 %v1832, 1.0
        %v1835 = vmul.f32 %v1827, %v1833
        %v1836 = vmul.f32 %v1828, %v1834
        %v1837 = vld [vmem:[%s750] sm:$0xff]
        %v1838 = vld [vmem:[%s750 + $0x8] sm:$0xff]
        %v1839 = vld [vmem:[%s750 + $0x10] sm:$0xff]
        %v1840 = vld [vmem:[%s750 + $0x18] sm:$0xff]
        %v1841 = vld [vmem:[%s750 + $0x20] sm:$0xff]
        %v1842 = vld [vmem:[%s750 + $0x28] sm:$0xff]
        %v1843 = vld [vmem:[%s750 + $0x30] sm:$0xff]
        %v1844 = vld [vmem:[%s750 + $0x38] sm:$0xff]
        %v1845 = vld [vmem:[%s753] sm:$0x1]
        %v1847 = vlaneseq
        %v1848 = vshrl.u32 %v1847, 7
        %v1849 = vsub.s32 0, %v1848
        %v1850 = vrot.slane %v1845, %v1849
        %vm1852 = vcmask 523264
        %v1854 = vsel %vm1852, %v1835, 0
        %v1857 = vsel %vm1852, %v1836, 0
        %1859 = vmatprep.subr.mxu0 0.0
        %1860 = vmatpush1.msra.mxu0 %v1837
        %1861 = vmatprep.subr.mxu0 0.0
        %1862 = vmatpush1.msra.mxu0 %v1838
        %1863 = vmatprep.subr.mxu0 0.0
        %1864 = vmatpush1.msra.mxu0 %v1839
        %1865 = vmatprep.subr.mxu0 0.0
        %1866 = vmatpush1.msra.mxu0 %v1840
        %1867 = vmatprep.subr.mxu0 0.0
        %1868 = vmatpush1.msra.mxu0 %v1841
        %1869 = vmatprep.subr.mxu0 0.0
        %1870 = vmatpush1.msra.mxu0 %v1842
        %1871 = vmatprep.subr.mxu0 0.0
        %1872 = vmatpush1.msra.mxu0 %v1843
        %1873 = vmatprep.subr.mxu0 0.0
        %1874 = vmatpush1.msra.mxu0 %v1844
        %1875 = vmatprep.subr.mxu0 0.0
        %1876 = vmatpush1.msra.mxu0 0.0
        %1877 = vmatprep.subr.mxu0 0.0
        %1878 = vmatpush1.msra.mxu0 0.0
        %1879 = vmatprep.subr.mxu0 0.0
        %1880 = vmatpush1.msra.mxu0 0.0
        %1881 = vmatprep.subr.mxu0 0.0
        %1882 = vmatpush1.msra.mxu0 0.0
        %1883 = vmatprep.subr.mxu0 0.0
        %1884 = vmatpush1.msra.mxu0 0.0
        %1885 = vmatprep.subr.mxu0 0.0
        %1886 = vmatpush1.msra.mxu0 0.0
        %1887 = vmatprep.subr.mxu0 0.0
        %1888 = vmatpush1.msra.mxu0 0.0
        %1889 = vmatprep.subr.mxu0 0.0
        %1890 = vmatpush1.msra.mxu0 0.0
        %1891 = vmatprep.subr.mxu0 0.0
        %1892 = vmatpush1.msra.mxu0 0.0
        %1893 = vmatprep.subr.mxu0 0.0
        %1894 = vmatpush1.msra.mxu0 0.0
        %1895 = vmatprep.subr.mxu0 0.0
        %1896 = vmatpush1.msra.mxu0 0.0
        %1897 = vmatprep.subr.mxu0 0.0
        %1898 = vmatpush1.msra.mxu0 0.0
        %1899 = vmatprep.subr.mxu0 0.0
        %1900 = vmatpush1.msra.mxu0 0.0
        %1901 = vmatprep.subr.mxu0 0.0
        %1902 = vmatpush1.msra.mxu0 0.0
        %1903 = vmatprep.subr.mxu0 0.0
        %1904 = vmatpush1.msra.mxu0 0.0
        %1905 = vmatprep.subr.mxu0 0.0
        %1906 = vmatpush1.msra.mxu0 0.0
        %1907 = vmatprep.subr.mxu0 0.0
        %1908 = vmatpush1.msra.mxu0 0.0
        %1909 = vmatprep.subr.mxu0 0.0
        %1910 = vmatpush1.msra.mxu0 0.0
        %1911 = vmatprep.subr.mxu0 0.0
        %1912 = vmatpush1.msra.mxu0 0.0
        %1913 = vmatprep.subr.mxu0 0.0
        %1914 = vmatpush1.msra.mxu0 0.0
        %1915 = vmatprep.subr.mxu0 0.0
        %1916 = vmatpush1.msra.mxu0 0.0
        %1917 = vmatprep.subr.mxu0 0.0
        %1918 = vmatpush1.msra.mxu0 0.0
        %1919 = vmatprep.subr.mxu0 0.0
        %1920 = vmatpush1.msra.mxu0 0.0
        %1921 = vmatprep.subr.mxu0 0.0
        %1922 = vmatpush1.msra.mxu0 0.0
        %1923 = vmatprep.mubr.f32.mxu0 0.0
        %1924 = vmatmul.mubr.f32.gmra.mrb[0].mxu0 %v1854
        %v1925 = vpop.f32.mrb[0].mxu0
        %v1926 = vadd.f32 %v1850, %v1925
        %v1927 = vpop.f32.mrb[0].mxu0
        %1928 = vmatprep.mubr.f32.mxu0 0.0
        %1929 = vmatmul.mubr.f32.gmra.mrb[0].mxu0 %v1857
        %v1930 = vpop.f32.mrb[0].mxu0
        %v1931 = vadd.f32 %v1850, %v1930
        %v1932 = vpop.f32.mrb[0].mxu0
        %1933 = vdwg.mxu0
        %v1934 = vadd.f32 %v1926, %v1733
        %v1935 = vadd.f32 %v1931, %v1734
        %v1936 = vld [vmem:[%s756] sm:$0x1]
        %v1937 = vld [vmem:[%s759] sm:$0x1]
        %v1938 = vsel %vm827, %v1934, 0.0
        %1939 = vadd.xlane.f32.xlu0 %v1938
        %v1940 = vpop.xlane.xlu0 %1939
        %v1941 = vsel %vm827, %v1935, 0.0
        %1942 = vadd.xlane.f32.xlu0 %v1941
        %v1943 = vpop.xlane.xlu0 %1942
        %v1944 = vmul.f32 %v1940, %v1698
        %v1945 = vmul.f32 %v1943, %v1698
        %v1946 = vsub.f32 %v1934, %v1944
        %v1947 = vsub.f32 %v1935, %v1945
        %v1948 = vmul.f32 %v1946, %v1946
        %v1949 = vmul.f32 %v1947, %v1947
        %v1950 = vsel %vm827, %v1948, 0.0
        %1951 = vadd.xlane.f32.xlu0 %v1950
        %v1952 = vpop.xlane.xlu0 %1951
        %v1953 = vsel %vm827, %v1949, 0.0
        %1954 = vadd.xlane.f32.xlu0 %v1953
        %v1955 = vpop.xlane.xlu0 %1954
        %v1956 = vmul.f32 %v1952, %v1698
        %v1957 = vmul.f32 %v1955, %v1698
        %v1958 = vadd.f32 %v1956, 1e-12
        %v1959 = vadd.f32 %v1957, 1e-12
        %v1960 = vrsqrt.pop %v1958
        %v1961 = vrsqrt.pop %v1959
        %v1962 = vmul.f32 %v1946, %v1960
        %v1963 = vmul.f32 %v1947, %v1961
        %v1965 = vlaneseq
        %v1966 = vshrl.u32 %v1965, 7
        %v1967 = vsub.s32 0, %v1966
        %v1968 = vrot.slane %v1936, %v1967
        %v1970 = vmul.f32 %v1962, %v1968
        %v1971 = vmul.f32 %v1963, %v1968
        %v1973 = vlaneseq
        %v1974 = vshrl.u32 %v1973, 7
        %v1975 = vsub.s32 0, %v1974
        %v1976 = vrot.slane %v1937, %v1975
        %v1978 = vadd.f32 %v1970, %v1976
        %v1979 = vadd.f32 %v1971, %v1976
        %1980 = vst.msk [vmem:[#allocation2] sm:$0xff] %vm827, %v1978
        %1981 = vst.msk [vmem:[#allocation2 + $0x8] sm:$0xff] %vm827, %v1979
        %p1982 = scmp.eq.s32.totalorder %s33, 1
        // Predicated region
        $region97: #{bert_encoder_forward.1} parent=91 // pred_check
          %p1983 = pneg %p1982
        $region98: #{bert_encoder_forward.1} parent=91 // pred_check_branch
          %1985 = sbr.rel (%p1983) target = $region100
        $region99: #{bert_encoder_forward.1} parent=91 // pred_region
          %v1987 = vrot.slane %v1979, 7
          %vm1989 = vcmask 1040384
          %v1990 = vsel %vm1989, %v1978, %v1987
          %v1991 = vld [vmem:[%s16] sm:$0xff]
          %v1992 = vld [vmem:[%s16 + $0x8] sm:$0xff]
          %v1993 = vld [vmem:[%s16 + $0x10] sm:$0xff]
          %v1994 = vld [vmem:[%s16 + $0x18] sm:$0xff]
          %v1995 = vld [vmem:[%s17] sm:$0x1]
          %v1997 = vlaneseq
          %v1998 = vshrl.u32 %v1997, 7
          %v1999 = vsub.s32 0, %v1998
          %v2000 = vrot.slane %v1995, %v1999
          %v2003 = vsel %vm827, %v1990, 0
          %2005 = vmatprep.subr.mxu0 0.0
          %2006 = vmatpush1.msra.mxu0 %v1991
          %2007 = vmatprep.subr.mxu0 0.0
          %2008 = vmatpush1.msra.mxu0 %v1992
          %2009 = vmatprep.subr.mxu0 0.0
          %2010 = vmatpush1.msra.mxu0 %v1993
          %2011 = vmatprep.subr.mxu0 0.0
          %2012 = vmatpush1.msra.mxu0 %v1994
          %2013 = vmatprep.subr.mxu0 0.0
          %2014 = vmatpush1.msra.mxu0 0.0
          %2015 = vmatprep.subr.mxu0 0.0
          %2016 = vmatpush1.msra.mxu0 0.0
          %2017 = vmatprep.subr.mxu0 0.0
          %2018 = vmatpush1.msra.mxu0 0.0
          %2019 = vmatprep.subr.mxu0 0.0
          %2020 = vmatpush1.msra.mxu0 0.0
          %2021 = vmatprep.subr.mxu0 0.0
          %2022 = vmatpush1.msra.mxu0 0.0
          %2023 = vmatprep.subr.mxu0 0.0
          %2024 = vmatpush1.msra.mxu0 0.0
          %2025 = vmatprep.subr.mxu0 0.0
          %2026 = vmatpush1.msra.mxu0 0.0
          %2027 = vmatprep.subr.mxu0 0.0
          %2028 = vmatpush1.msra.mxu0 0.0
          %2029 = vmatprep.subr.mxu0 0.0
          %2030 = vmatpush1.msra.mxu0 0.0
          %2031 = vmatprep.subr.mxu0 0.0
          %2032 = vmatpush1.msra.mxu0 0.0
          %2033 = vmatprep.subr.mxu0 0.0
          %2034 = vmatpush1.msra.mxu0 0.0
          %2035 = vmatprep.subr.mxu0 0.0
          %2036 = vmatpush1.msra.mxu0 0.0
          %2037 = vmatprep.subr.mxu0 0.0
          %2038 = vmatpush1.msra.mxu0 0.0
          %2039 = vmatprep.subr.mxu0 0.0
          %2040 = vmatpush1.msra.mxu0 0.0
          %2041 = vmatprep.subr.mxu0 0.0
          %2042 = vmatpush1.msra.mxu0 0.0
          %2043 = vmatprep.subr.mxu0 0.0
          %2044 = vmatpush1.msra.mxu0 0.0
          %2045 = vmatprep.subr.mxu0 0.0
          %2046 = vmatpush1.msra.mxu0 0.0
          %2047 = vmatprep.subr.mxu0 0.0
          %2048 = vmatpush1.msra.mxu0 0.0
          %2049 = vmatprep.subr.mxu0 0.0
          %2050 = vmatpush1.msra.mxu0 0.0
          %2051 = vmatprep.subr.mxu0 0.0
          %2052 = vmatpush1.msra.mxu0 0.0
          %2053 = vmatprep.subr.mxu0 0.0
          %2054 = vmatpush1.msra.mxu0 0.0
          %2055 = vmatprep.subr.mxu0 0.0
          %2056 = vmatpush1.msra.mxu0 0.0
          %2057 = vmatprep.subr.mxu0 0.0
          %2058 = vmatpush1.msra.mxu0 0.0
          %2059 = vmatprep.subr.mxu0 0.0
          %2060 = vmatpush1.msra.mxu0 0.0
          %2061 = vmatprep.subr.mxu0 0.0
          %2062 = vmatpush1.msra.mxu0 0.0
          %2063 = vmatprep.subr.mxu0 0.0
          %2064 = vmatpush1.msra.mxu0 0.0
          %2065 = vmatprep.subr.mxu0 0.0
          %2066 = vmatpush1.msra.mxu0 0.0
          %2067 = vmatprep.subr.mxu0 0.0
          %2068 = vmatpush1.msra.mxu0 0.0
          %2069 = vmatprep.mubr.f32.mxu0 0.0
          %2070 = vmatmul.mubr.f32.gmra.mrb[0].mxu0 %v2003
          %v2071 = vpop.f32.mrb[0].mxu0
          %v2072 = vadd.f32 %v2000, %v2071
          %v2073 = vpop.f32.mrb[0].mxu0
          %2074 = vdwg.mxu0
          %v2075 = vtanh.pop %v2072
          %vm2076 = vcmask 254976
          %2077 = vst.msk [vmem:[#allocation4] sm:$0x3] %vm2076, %v2075
        $region100: #{bert_encoder_forward.1} parent=91 // pred_fallthru
          _
        // Predicated region
        $region101: #{bert_encoder_forward.1} parent=91 // pred_check
          %p2078 = pneg %p484
        $region102: #{bert_encoder_forward.1} parent=91 // pred_check_branch
          %2080 = sbr.rel (%p2078) target = $region104
        $region103: #{bert_encoder_forward.1} parent=91 // pred_region
          %s2082 = ssub.s32 256, 256
          %2083 = vsyncadd [#allocation3], %s2082
          %s2084 = sshll.u32 [#allocation2], 4
          %s2085 = int_to_ptr.vmem [resolvable:$true] %s2084
          %2090 = dma.vmem_to_hbm [thread:$0]  %s2085, 256, %s18, [#allocation3], 128, 128, 8
        $region104: #{bert_encoder_forward.1} parent=91 // pred_fallthru
          _
        // Predicated region
        $region105: #{bert_encoder_forward.1} parent=91 // pred_check
          %p2091 = pneg %p505
        $region106: #{bert_encoder_forward.1} parent=91 // pred_check_branch
          %2093 = sbr.rel (%p2091) target = $region108
        $region107: #{bert_encoder_forward.1} parent=91 // pred_region
          %s2095 = ssub.s32 32, 32
          %2096 = vsyncadd [#allocation5], %s2095
          %s2098 = sshll.u32 [#allocation4], 4
          %s2099 = int_to_ptr.vmem [resolvable:$true] %s2098
          %2101 = dma.vmem_to_hbm [thread:$0]  %s2099, 32, %s19, [#allocation5]
        $region108: #{bert_encoder_forward.1} parent=91 // pred_fallthru
          _
        // Predicated region
        $region109: #{bert_encoder_forward.1} parent=91 // pred_check
          %p2102 = pneg %p484
        $region110: #{bert_encoder_forward.1} parent=91 // pred_check_branch
          %2104 = sbr.rel (%p2102) target = $region112
        $region111: #{bert_encoder_forward.1} parent=91 // pred_region
          %2105 = dma.done [#allocation3], 256
        $region112: #{bert_encoder_forward.1} parent=91 // pred_fallthru
          _
        // Predicated region
        $region113: #{bert_encoder_forward.1} parent=91 // pred_check
          %p2106 = pneg %p505
        $region114: #{bert_encoder_forward.1} parent=91 // pred_check_branch
          %2108 = sbr.rel (%p2106) target = $region116
        $region115: #{bert_encoder_forward.1} parent=91 // pred_region
          %2109 = dma.done [#allocation5], 32
        $region116: #{bert_encoder_forward.1} parent=91 // pred_fallthru
          _
      $region92: #{bert_encoder_forward.1} parent=5 // pred_fallthru
        _
      %p2110 = scmp.le.s32.totalorder 2, %s28
      // Predicated region
      $region117: #{bert_encoder_forward.1} parent=5 // pred_check
        %p2111 = pneg %p2110
      $region118: #{bert_encoder_forward.1} parent=5 // pred_check_branch
        %2113 = sbr.rel (%p2111) target = $region120
      $region119: #{bert_encoder_forward.1} parent=5 // pred_region
        %s2114 = ssub.s32 %s28, 2
      $region120: #{bert_encoder_forward.1} parent=5 // pred_fallthru
        _
    $region6: #{bert_encoder_forward.1} parent=1 // loop_footer
      %s32 = sadd.s32 1, %s28
    $region7: #{bert_encoder_forward.1} parent=1 // loop_footer_branch
      %27 = sbr.rel target = $region3
    $region8: #{bert_encoder_forward.1} parent=1 // loop_exit
      _
    %2115 = vsyncpa [#allocation3], 1
    %s2116 = scalar_lea.sflag [#allocation3], 1
    %2117 = vsyncpa %s2116, 1
    %2118 = vsyncpa [#allocation5], 1

</llo_original>
